<compile_context>
chip_gen: v6e
topology: v6e:2x2x1
jax: 0.10.0
libtpu: 0.0.40
codegen_flags: <defaults>
</compile_context>

<pallas_src>
from functools import reduce

import jax
import jax.numpy as jnp
from jax.experimental import pallas as pl
from jax.experimental.pallas import tpu as pltpu

IMAGE_SIZE = (1, 32, 32)
NC = 1            # adversarial output dim (real/fake)
NUM_CLASS = 10    # classification head output dim
HEAD_PAD = 128    # lane-dense fused head width: [adv | cls | zero pad]
BN_EPS = 1e-5
LEAKY_SLOPE = 0.2


def _leaky_relu(x):
    return jnp.where(x > 0, x, LEAKY_SLOPE * x)


def discriminator_kernel(
    x_ref,                 # (B, 1024)   f32
    w1_ref, b1_ref,        # (1024, 512) bf16, (1, 512) f32
    w2_ref, b2_ref,        # (512, 256)  bf16, (1, 256) f32
    gamma_ref, beta_ref,   # (1, 256) f32, (1, 256) f32
    wh_ref, bh_ref,        # (256, 128)  bf16, (1, 128) f32  (fused adv|cls head)
    head_ref,              # (B, 128) f32 output (lane-dense, unmasked store)
):
    # input_layer: Linear(1024 -> 512) + LeakyReLU(0.2)
    x_bf = x_ref[...].astype(jnp.bfloat16)
    h1 = jnp.dot(x_bf, w1_ref[...], preferred_element_type=jnp.float32) + b1_ref[...]
    h1 = _leaky_relu(h1)

    # layer1: Linear(512 -> 256) + BatchNorm1d (training-mode batch stats) + LeakyReLU(0.2)
    h2 = jnp.dot(h1.astype(jnp.bfloat16), w2_ref[...],
                 preferred_element_type=jnp.float32) + b2_ref[...]
    mean = jnp.mean(h2, axis=0, keepdims=True)
    diff = h2 - mean
    var = jnp.mean(diff * diff, axis=0, keepdims=True)   # biased var (PyTorch normalization)
    h2 = diff * jax.lax.rsqrt(var + BN_EPS)
    h2 = h2 * gamma_ref[...] + beta_ref[...]
    h2 = _leaky_relu(h2)

    # fused heads: single lane-dense (256, 128) matmul -> (B, 128)
    z = jnp.dot(h2.astype(jnp.bfloat16), wh_ref[...],
                preferred_element_type=jnp.float32) + bh_ref[...]
    # Sigmoid only on the adversarial columns (first NC lanes); exp goes to EUP,
    # divide goes to EUP via approximate reciprocal.
    sig = pl.reciprocal(1.0 + jnp.exp(-z), approx=True)
    col = jax.lax.broadcasted_iota(jnp.int32, z.shape, 1)
    head_ref[...] = jnp.where(col < NC, sig, z)


def discriminator_forward(x_nchw, params):
    """x_nchw: (B, C, H, W) float32. Returns (adv (B, NC), cls (B, NUM_CLASS))."""
    B = x_nchw.shape[0]
    input_size = reduce(lambda a, b: a * b, x_nchw.shape[1:])
    x = x_nchw.reshape(B, input_size)  # row-major flatten, same as torch .view

    (w1, b1, w2, b2, gamma, beta, wa, ba, wc, bc) = params

    # bf16 weights for the MXU (halves weight DMA bytes); biases/BN params stay f32.
    w1_bf = w1.astype(jnp.bfloat16)
    w2_bf = w2.astype(jnp.bfloat16)

    # Fuse adv + cls into one zero-padded lane-dense (256, HEAD_PAD) weight / bias.
    wh = jnp.zeros((w2.shape[1], HEAD_PAD), jnp.float32)
    wh = wh.at[:, :NC].set(wa).at[:, NC:NC + NUM_CLASS].set(wc)
    wh_bf = wh.astype(jnp.bfloat16)
    bh = jnp.zeros((1, HEAD_PAD), jnp.float32)
    bh = bh.at[:, :NC].set(ba).at[:, NC:NC + NUM_CLASS].set(bc)

    vmem = pl.BlockSpec(memory_space=pltpu.MemorySpace.VMEM)

    flops = 2 * B * (input_size * 512 + 512 * 256 + 256 * HEAD_PAD)
    bytes_accessed = (
        w1_bf.size * 2 + w2_bf.size * 2 + wh_bf.size * 2          # bf16 weights
        + x.size * 4 + B * HEAD_PAD * 4                           # input + output
        + (b1.size + b2.size + gamma.size + beta.size + bh.size) * 4
    )
    cost = pl.CostEstimate(flops=flops, transcendentals=B * HEAD_PAD,
                           bytes_accessed=bytes_accessed)

    head = pl.pallas_call(
        discriminator_kernel,
        out_shape=jax.ShapeDtypeStruct((B, HEAD_PAD), jnp.float32),
        in_specs=[vmem] * 9,
        out_specs=vmem,
        cost_estimate=cost,
    )(x, w1_bf, b1, w2_bf, b2, gamma, beta, wh_bf, bh)

    adv = head[:, :NC]
    cls = head[:, NC:NC + NUM_CLASS]
    return adv, cls


def init_params(key, input_size, nc=NC, num_class=NUM_CLASS):
    """Deterministic synthetic parameters. Weights stored as (in, out) for the kernel."""
    ks = jax.random.split(key, 8)

    def linear(kw, kb, fan_in, fan_out):
        # rough kaiming-uniform style scale; deterministic, not a checkpoint
        bound = 1.0 / jnp.sqrt(fan_in)
        w = jax.random.uniform(kw, (fan_in, fan_out), jnp.float32, -bound, bound)
        b = jax.random.uniform(kb, (1, fan_out), jnp.float32, -bound, bound)
        return w, b

    w1, b1 = linear(ks[0], ks[1], input_size, 512)
    w2, b2 = linear(ks[2], ks[3], 512, 256)
    gamma = jnp.ones((1, 256), jnp.float32)   # BatchNorm1d default affine params
    beta = jnp.zeros((1, 256), jnp.float32)
    wa, ba = linear(ks[4], ks[5], 256, nc)
    wc, bc = linear(ks[6], ks[7], 256, num_class)
    return (w1, b1, w2, b2, gamma, beta, wa, ba, wc, bc)


if __name__ == "__main__":
    key = jax.random.PRNGKey(0)
    k_x, k_p = jax.random.split(key)

    B = 8  # small batch (multiple of 8 sublanes); BN stats computed over the full batch
    x = jax.random.normal(k_x, (B,) + IMAGE_SIZE, jnp.float32)  # NCHW (B, 1, 32, 32)

    input_size = reduce(lambda a, b: a * b, IMAGE_SIZE)
    params = init_params(k_p, input_size)

    adv, cls = discriminator_forward(x, params)
    jax.block_until_ready((adv, cls))

    assert adv.shape == (B, NC) and cls.shape == (B, NUM_CLASS)
    assert bool(jnp.all(jnp.isfinite(adv))) and bool(jnp.all(jnp.isfinite(cls)))
    # sigmoid range (small slack for the EUP approximate reciprocal)
    assert bool(jnp.all((adv >= -1e-4) & (adv <= 1.0 + 1e-4)))
    print("KERNEL_OK")
</pallas_src>

<mosaic_0001>
module attributes {stable_mosaic.version = 11 : i64} {
  func.func @discriminator_kernel(%arg0: memref<8x1024xf32, #tpu.memory_space<vmem>>, %arg1: memref<1024x512xbf16, #tpu.memory_space<vmem>>, %arg2: memref<1x512xf32, #tpu.memory_space<vmem>>, %arg3: memref<512x256xbf16, #tpu.memory_space<vmem>>, %arg4: memref<1x256xf32, #tpu.memory_space<vmem>>, %arg5: memref<1x256xf32, #tpu.memory_space<vmem>>, %arg6: memref<1x256xf32, #tpu.memory_space<vmem>>, %arg7: memref<256x128xbf16, #tpu.memory_space<vmem>>, %arg8: memref<1x128xf32, #tpu.memory_space<vmem>>, %arg9: memref<8x128xf32, #tpu.memory_space<vmem>>) attributes {dimension_semantics = [], scalar_prefetch = 0 : i64, scratch_operands = 0 : i64, tpu.core_type = #tpu.core_type<tc>} {
    %c0 = arith.constant 0 : index
    %c0_0 = arith.constant 0 : index
    %0 = vector.load %arg0[%c0, %c0_0] : memref<8x1024xf32, #tpu.memory_space<vmem>>, vector<8x1024xf32>
    %1 = arith.truncf %0 : vector<8x1024xf32> to vector<8x1024xbf16>
    %c0_1 = arith.constant 0 : index
    %c0_2 = arith.constant 0 : index
    %2 = vector.load %arg1[%c0_1, %c0_2] : memref<1024x512xbf16, #tpu.memory_space<vmem>>, vector<1024x512xbf16>
    %cst = arith.constant dense<0.000000e+00> : vector<8x512xf32>
    %3 = tpu.matmul %1, %2, %cst {dimension_numbers = #tpu.dot_dimension_numbers<[1], [0], [0], [1], [0, 0, 1, 1], [], []>} : vector<8x1024xbf16>, vector<1024x512xbf16>, vector<8x512xf32> -> vector<8x512xf32>
    %c0_3 = arith.constant 0 : index
    %c0_4 = arith.constant 0 : index
    %4 = vector.load %arg2[%c0_3, %c0_4] : memref<1x512xf32, #tpu.memory_space<vmem>>, vector<1x512xf32>
    %5 = vector.broadcast %4 : vector<1x512xf32> to vector<8x512xf32>
    %6 = arith.addf %3, %5 : vector<8x512xf32>
    %cst_5 = arith.constant 0.000000e+00 : f32
    %7 = vector.broadcast %cst_5 : f32 to vector<8x512xf32>
    %8 = arith.cmpf ogt, %6, %7 : vector<8x512xf32>
    %cst_6 = arith.constant 2.000000e-01 : f32
    %9 = vector.broadcast %cst_6 : f32 to vector<8x512xf32>
    %10 = arith.mulf %9, %6 : vector<8x512xf32>
    %11 = arith.select %8, %6, %10 : vector<8x512xi1>, vector<8x512xf32>
    %12 = arith.truncf %11 : vector<8x512xf32> to vector<8x512xbf16>
    %c0_7 = arith.constant 0 : index
    %c0_8 = arith.constant 0 : index
    %13 = vector.load %arg3[%c0_7, %c0_8] : memref<512x256xbf16, #tpu.memory_space<vmem>>, vector<512x256xbf16>
    %cst_9 = arith.constant dense<0.000000e+00> : vector<8x256xf32>
    %14 = tpu.matmul %12, %13, %cst_9 {dimension_numbers = #tpu.dot_dimension_numbers<[1], [0], [0], [1], [0, 0, 1, 1], [], []>} : vector<8x512xbf16>, vector<512x256xbf16>, vector<8x256xf32> -> vector<8x256xf32>
    %c0_10 = arith.constant 0 : index
    %c0_11 = arith.constant 0 : index
    %15 = vector.load %arg4[%c0_10, %c0_11] : memref<1x256xf32, #tpu.memory_space<vmem>>, vector<1x256xf32>
    %16 = vector.broadcast %15 : vector<1x256xf32> to vector<8x256xf32>
    %17 = arith.addf %14, %16 : vector<8x256xf32>
    %cst_12 = arith.constant dense<0.000000e+00> : vector<256xf32>
    %18 = vector.multi_reduction <add>, %17, %cst_12 [0] : vector<8x256xf32> to vector<256xf32>
    %19 = vector.shape_cast %18 : vector<256xf32> to vector<1x256xf32>
    %cst_13 = arith.constant 8.000000e+00 : f32
    %20 = vector.broadcast %cst_13 : f32 to vector<1x256xf32>
    %21 = arith.divf %19, %20 : vector<1x256xf32>
    %22 = vector.broadcast %21 : vector<1x256xf32> to vector<8x256xf32>
    %23 = arith.subf %17, %22 : vector<8x256xf32>
    %24 = arith.mulf %23, %23 : vector<8x256xf32>
    %cst_14 = arith.constant dense<0.000000e+00> : vector<256xf32>
    %25 = vector.multi_reduction <add>, %24, %cst_14 [0] : vector<8x256xf32> to vector<256xf32>
    %26 = vector.shape_cast %25 : vector<256xf32> to vector<1x256xf32>
    %cst_15 = arith.constant 8.000000e+00 : f32
    %27 = vector.broadcast %cst_15 : f32 to vector<1x256xf32>
    %28 = arith.divf %26, %27 : vector<1x256xf32>
    %cst_16 = arith.constant 9.99999974E-6 : f32
    %29 = vector.broadcast %cst_16 : f32 to vector<1x256xf32>
    %30 = arith.addf %28, %29 : vector<1x256xf32>
    %31 = math.rsqrt %30 : vector<1x256xf32>
    %32 = vector.broadcast %31 : vector<1x256xf32> to vector<8x256xf32>
    %33 = arith.mulf %23, %32 : vector<8x256xf32>
    %c0_17 = arith.constant 0 : index
    %c0_18 = arith.constant 0 : index
    %34 = vector.load %arg5[%c0_17, %c0_18] : memref<1x256xf32, #tpu.memory_space<vmem>>, vector<1x256xf32>
    %35 = vector.broadcast %34 : vector<1x256xf32> to vector<8x256xf32>
    %36 = arith.mulf %33, %35 : vector<8x256xf32>
    %c0_19 = arith.constant 0 : index
    %c0_20 = arith.constant 0 : index
    %37 = vector.load %arg6[%c0_19, %c0_20] : memref<1x256xf32, #tpu.memory_space<vmem>>, vector<1x256xf32>
    %38 = vector.broadcast %37 : vector<1x256xf32> to vector<8x256xf32>
    %39 = arith.addf %36, %38 : vector<8x256xf32>
    %cst_21 = arith.constant 0.000000e+00 : f32
    %40 = vector.broadcast %cst_21 : f32 to vector<8x256xf32>
    %41 = arith.cmpf ogt, %39, %40 : vector<8x256xf32>
    %cst_22 = arith.constant 2.000000e-01 : f32
    %42 = vector.broadcast %cst_22 : f32 to vector<8x256xf32>
    %43 = arith.mulf %42, %39 : vector<8x256xf32>
    %44 = arith.select %41, %39, %43 : vector<8x256xi1>, vector<8x256xf32>
    %45 = arith.truncf %44 : vector<8x256xf32> to vector<8x256xbf16>
    %c0_23 = arith.constant 0 : index
    %c0_24 = arith.constant 0 : index
    %46 = vector.load %arg7[%c0_23, %c0_24] : memref<256x128xbf16, #tpu.memory_space<vmem>>, vector<256x128xbf16>
    %cst_25 = arith.constant dense<0.000000e+00> : vector<8x128xf32>
    %47 = tpu.matmul %45, %46, %cst_25 {dimension_numbers = #tpu.dot_dimension_numbers<[1], [0], [0], [1], [0, 0, 1, 1], [], []>} : vector<8x256xbf16>, vector<256x128xbf16>, vector<8x128xf32> -> vector<8x128xf32>
    %c0_26 = arith.constant 0 : index
    %c0_27 = arith.constant 0 : index
    %48 = vector.load %arg8[%c0_26, %c0_27] : memref<1x128xf32, #tpu.memory_space<vmem>>, vector<1x128xf32>
    %49 = vector.broadcast %48 : vector<1x128xf32> to vector<8x128xf32>
    %50 = arith.addf %47, %49 : vector<8x128xf32>
    %cst_28 = arith.constant 0.000000e+00 : f32
    %51 = vector.broadcast %cst_28 : f32 to vector<8x128xf32>
    %52 = arith.subf %51, %50 : vector<8x128xf32>
    %53 = math.exp %52 : vector<8x128xf32>
    %cst_29 = arith.constant 1.000000e+00 : f32
    %54 = vector.broadcast %cst_29 : f32 to vector<8x128xf32>
    %55 = arith.addf %54, %53 : vector<8x128xf32>
    %56 = tpu.reciprocal %55 {approx = true} : vector<8x128xf32> -> vector<8x128xf32>
    %57 = tpu.iota {dimensions = array<i32: 1>} : vector<8x128xi32>
    %c1_i32 = arith.constant 1 : i32
    %58 = vector.broadcast %c1_i32 : i32 to vector<8x128xi32>
    %59 = arith.cmpi slt, %57, %58 : vector<8x128xi32>
    %60 = arith.select %59, %56, %50 : vector<8x128xi1>, vector<8x128xf32>
    %c0_30 = arith.constant 0 : index
    %c0_31 = arith.constant 0 : index
    %61 = vector.load %arg9[%c0_30, %c0_31] : memref<8x128xf32, #tpu.memory_space<vmem>>, vector<8x128xf32>
    tpu.vector_store %arg9[%c0_30, %c0_31], %60 {strides = array<i32>} : memref<8x128xf32, #tpu.memory_space<vmem>>, vector<8x128xf32>,
    return
  }
}

</mosaic_0001>

<llo_original>
// kernel: tpu_custom_call.1
$region0: #{tpu_custom_call.1}
  #allocation0 [shape = 'u32[]', space=smem, size = 0x4, offset = 0x4, fixed_abs, tag = 'smem constant byte address 0x4 - core index']
  #allocation1 [shape = 'u32[144,128]{1,0:T(1,128)}', space=vmem, size = 0x12000, scoped, tag = 'internal scratch']
  %s0 = inlined_call_operand.hbm [shape: f32[8,1024], index: 0, kind: input, shape index: {}]
  %s1 = inlined_call_operand.hbm [shape: bf16[1024,512], index: 1, kind: input, shape index: {}]
  %s2 = inlined_call_operand.hbm [shape: f32[1,512], index: 2, kind: input, shape index: {}]
  %s3 = inlined_call_operand.hbm [shape: bf16[512,256], index: 3, kind: input, shape index: {}]
  %s4 = inlined_call_operand.vmem [shape: f32[1,256], index: 4, kind: input, shape index: {}]
  %s5 = inlined_call_operand.vmem [shape: f32[1,256], index: 5, kind: input, shape index: {}]
  %s6 = inlined_call_operand.vmem [shape: f32[1,256], index: 6, kind: input, shape index: {}]
  %s7 = inlined_call_operand.hbm [shape: bf16[256,128], index: 7, kind: input, shape index: {}]
  %s8 = inlined_call_operand.vmem [shape: f32[1,128], index: 8, kind: input, shape index: {}]
  %s9 = inlined_call_operand.hbm [shape: f32[8,128], index: 9, kind: output, shape index: {}]
  %s10 = sld [smem:[#allocation0]]
  $region66: #{tpu_custom_call.1} parent=0
    _
  %s12 = ssub.s32 1, %s10
  %s13 = scalar_select 0, %s12, %s10
  $region1: #{tpu_custom_call.1} parent=0
    #allocation2 [shape = 'u8[32768]{0}', space=vmem, size = 0x8000, scoped, tag = 'input window, operand 0, single buffered']
    #allocation3 [shape = 's32[1]{0}', space=sflag, size = 0x4, scoped, tag = 'scoped memory for tpu_custom_call.1']
    #allocation4 [shape = 's32[1]{0}', space=sflag, size = 0x4, scoped, tag = 'scoped memory for tpu_custom_call.1']
    #allocation5 [shape = 'u8[1048576]{0}', space=vmem, size = 0x100000, scoped, tag = 'input window, operand 1, single buffered']
    #allocation6 [shape = 's32[1]{0}', space=sflag, size = 0x4, scoped, tag = 'scoped memory for tpu_custom_call.1']
    #allocation7 [shape = 'u8[2048]{0}', space=vmem, size = 0x800, scoped, tag = 'input window, operand 2, single buffered']
    #allocation8 [shape = 'u8[262144]{0}', space=vmem, size = 0x40000, scoped, tag = 'input window, operand 3, single buffered']
    #allocation9 [shape = 's32[1]{0}', space=sflag, size = 0x4, scoped, tag = 'scoped memory for tpu_custom_call.1']
    #allocation10 [shape = 'u8[65536]{0}', space=vmem, size = 0x10000, scoped, tag = 'input window, operand 7, single buffered']
    #allocation11 [shape = 'u8[4096]{0}', space=vmem, size = 0x1000, scoped, tag = 'output window, operand 0, single buffered']
    %14 = vsyncpa [#allocation3], 0
    %15 = vsyncpa [#allocation6], 0
    %16 = vsyncpa [#allocation9], 0
    %17 = vsyncpa [#allocation4], 0
    // Predicated region
    $region2: #{tpu_custom_call.1} parent=1 // pred_check
      _
    $region3: #{tpu_custom_call.1} parent=1 // pred_check_branch
      %19 = sbr.rel (0) target = $region5
    $region4: #{tpu_custom_call.1} parent=1 // pred_region
      %s21 = ssub.s32 1024, 1024
      %22 = vsyncadd [#allocation3], %s21
      %s24 = sshll.u32 [#allocation2], 4
      %s25 = int_to_ptr.vmem [resolvable:$true] %s24
      %27 = dma.hbm_to_vmem [thread:$0]  %s0, 1024, %s25, [#allocation3]
    $region5: #{tpu_custom_call.1} parent=1 // pred_fallthru
      _
    // Predicated region
    $region6: #{tpu_custom_call.1} parent=1 // pred_check
      _
    $region7: #{tpu_custom_call.1} parent=1 // pred_check_branch
      %29 = sbr.rel (0) target = $region9
    $region8: #{tpu_custom_call.1} parent=1 // pred_region
      %s31 = ssub.s32 32768, 32768
      %32 = vsyncadd [#allocation6], %s31
      %s33 = sshll.u32 [#allocation5], 4
      %s34 = int_to_ptr.vmem [resolvable:$true] %s33
      %39 = dma.hbm_to_vmem [thread:$0]  %s1, 32768, %s34, [#allocation6], 256, 256, 16
    $region9: #{tpu_custom_call.1} parent=1 // pred_fallthru
      _
    // Predicated region
    $region10: #{tpu_custom_call.1} parent=1 // pred_check
      _
    $region11: #{tpu_custom_call.1} parent=1 // pred_check_branch
      %41 = sbr.rel (0) target = $region13
    $region12: #{tpu_custom_call.1} parent=1 // pred_region
      %s43 = ssub.s32 64, 64
      %44 = vsyncadd [#allocation6], %s43
      %s46 = sshll.u32 [#allocation7], 4
      %s47 = int_to_ptr.vmem [resolvable:$true] %s46
      %49 = dma.hbm_to_vmem [thread:$0]  %s2, 64, %s47, [#allocation6]
    $region13: #{tpu_custom_call.1} parent=1 // pred_fallthru
      _
    // Predicated region
    $region14: #{tpu_custom_call.1} parent=1 // pred_check
      _
    $region15: #{tpu_custom_call.1} parent=1 // pred_check_branch
      %51 = sbr.rel (0) target = $region17
    $region16: #{tpu_custom_call.1} parent=1 // pred_region
      %s53 = ssub.s32 8192, 8192
      %54 = vsyncadd [#allocation9], %s53
      %s55 = sshll.u32 [#allocation8], 4
      %s56 = int_to_ptr.vmem [resolvable:$true] %s55
      %61 = dma.hbm_to_vmem [thread:$0]  %s3, 8192, %s56, [#allocation9], 128, 128, 8
    $region17: #{tpu_custom_call.1} parent=1 // pred_fallthru
      _
    // Predicated region
    $region18: #{tpu_custom_call.1} parent=1 // pred_check
      _
    $region19: #{tpu_custom_call.1} parent=1 // pred_check_branch
      %63 = sbr.rel (0) target = $region21
    $region20: #{tpu_custom_call.1} parent=1 // pred_region
      _
    $region21: #{tpu_custom_call.1} parent=1 // pred_fallthru
      _
    // Predicated region
    $region22: #{tpu_custom_call.1} parent=1 // pred_check
      _
    $region23: #{tpu_custom_call.1} parent=1 // pred_check_branch
      %65 = sbr.rel (0) target = $region25
    $region24: #{tpu_custom_call.1} parent=1 // pred_region
      _
    $region25: #{tpu_custom_call.1} parent=1 // pred_fallthru
      _
    // Predicated region
    $region26: #{tpu_custom_call.1} parent=1 // pred_check
      _
    $region27: #{tpu_custom_call.1} parent=1 // pred_check_branch
      %67 = sbr.rel (0) target = $region29
    $region28: #{tpu_custom_call.1} parent=1 // pred_region
      _
    $region29: #{tpu_custom_call.1} parent=1 // pred_fallthru
      _
    // Predicated region
    $region30: #{tpu_custom_call.1} parent=1 // pred_check
      _
    $region31: #{tpu_custom_call.1} parent=1 // pred_check_branch
      %69 = sbr.rel (0) target = $region33
    $region32: #{tpu_custom_call.1} parent=1 // pred_region
      %s71 = ssub.s32 2048, 2048
      %72 = vsyncadd [#allocation9], %s71
      %s73 = sshll.u32 [#allocation10], 4
      %s74 = int_to_ptr.vmem [resolvable:$true] %s73
      %79 = dma.hbm_to_vmem [thread:$0]  %s7, 2048, %s74, [#allocation9], 64, 64, 4
    $region33: #{tpu_custom_call.1} parent=1 // pred_fallthru
      _
    // Predicated region
    $region34: #{tpu_custom_call.1} parent=1 // pred_check
      _
    $region35: #{tpu_custom_call.1} parent=1 // pred_check_branch
      %81 = sbr.rel (0) target = $region37
    $region36: #{tpu_custom_call.1} parent=1 // pred_region
      _
    $region37: #{tpu_custom_call.1} parent=1 // pred_fallthru
      _
    // Predicated region
    $region38: #{tpu_custom_call.1} parent=1 // pred_check
      _
    $region39: #{tpu_custom_call.1} parent=1 // pred_check_branch
      %83 = sbr.rel (0) target = $region41
    $region40: #{tpu_custom_call.1} parent=1 // pred_region
      %84 = dma.done [#allocation3], 1024
    $region41: #{tpu_custom_call.1} parent=1 // pred_fallthru
      _
    // Predicated region
    $region42: #{tpu_custom_call.1} parent=1 // pred_check
      _
    $region43: #{tpu_custom_call.1} parent=1 // pred_check_branch
      %86 = sbr.rel (0) target = $region45
    $region44: #{tpu_custom_call.1} parent=1 // pred_region
      %87 = dma.done [#allocation6], 32768
    $region45: #{tpu_custom_call.1} parent=1 // pred_fallthru
      _
    // Predicated region
    $region46: #{tpu_custom_call.1} parent=1 // pred_check
      _
    $region47: #{tpu_custom_call.1} parent=1 // pred_check_branch
      %89 = sbr.rel (0) target = $region49
    $region48: #{tpu_custom_call.1} parent=1 // pred_region
      %90 = dma.done [#allocation6], 64
    $region49: #{tpu_custom_call.1} parent=1 // pred_fallthru
      _
    // Predicated region
    $region50: #{tpu_custom_call.1} parent=1 // pred_check
      _
    $region51: #{tpu_custom_call.1} parent=1 // pred_check_branch
      %92 = sbr.rel (0) target = $region53
    $region52: #{tpu_custom_call.1} parent=1 // pred_region
      %93 = dma.done [#allocation9], 8192
    $region53: #{tpu_custom_call.1} parent=1 // pred_fallthru
      _
    // Predicated region
    $region54: #{tpu_custom_call.1} parent=1 // pred_check
      _
    $region55: #{tpu_custom_call.1} parent=1 // pred_check_branch
      %95 = sbr.rel (0) target = $region57
    $region56: #{tpu_custom_call.1} parent=1 // pred_region
      %96 = dma.done [#allocation9], 2048
    $region57: #{tpu_custom_call.1} parent=1 // pred_fallthru
      _
    %v98 = vld [vmem:[#allocation2] sm:$0xff]
    %v99 = vld [vmem:[#allocation2 + $0x8] sm:$0xff]
    %v100 = vld [vmem:[#allocation2 + $0x10] sm:$0xff]
    %v101 = vld [vmem:[#allocation2 + $0x18] sm:$0xff]
    %v102 = vld [vmem:[#allocation2 + $0x20] sm:$0xff]
    %v103 = vld [vmem:[#allocation2 + $0x28] sm:$0xff]
    %v104 = vld [vmem:[#allocation2 + $0x30] sm:$0xff]
    %v105 = vld [vmem:[#allocation2 + $0x38] sm:$0xff]
    %v106 = vpack.c.bf16 %v98, %v98
    %v107 = vpack.c.bf16 %v99, %v99
    %v108 = vpack.c.bf16 %v100, %v100
    %v109 = vpack.c.bf16 %v101, %v101
    %v110 = vpack.c.bf16 %v102, %v102
    %v111 = vpack.c.bf16 %v103, %v103
    %v112 = vpack.c.bf16 %v104, %v104
    %v113 = vpack.c.bf16 %v105, %v105
    %v114 = vld [vmem:[#allocation5] sm:$0xff]
    %v115 = vld [vmem:[#allocation5 + $0x8] sm:$0xff]
    %v116 = vld [vmem:[#allocation5 + $0x10] sm:$0xff]
    %v117 = vld [vmem:[#allocation5 + $0x18] sm:$0xff]
    %v118 = vld [vmem:[#allocation5 + $0x20] sm:$0xff]
    %v119 = vld [vmem:[#allocation5 + $0x28] sm:$0xff]
    %v120 = vld [vmem:[#allocation5 + $0x30] sm:$0xff]
    %v121 = vld [vmem:[#allocation5 + $0x38] sm:$0xff]
    %v122 = vld [vmem:[#allocation5 + $0x40] sm:$0xff]
    %v123 = vld [vmem:[#allocation5 + $0x48] sm:$0xff]
    %v124 = vld [vmem:[#allocation5 + $0x50] sm:$0xff]
    %v125 = vld [vmem:[#allocation5 + $0x58] sm:$0xff]
    %v126 = vld [vmem:[#allocation5 + $0x60] sm:$0xff]
    %v127 = vld [vmem:[#allocation5 + $0x68] sm:$0xff]
    %v128 = vld [vmem:[#allocation5 + $0x70] sm:$0xff]
    %v129 = vld [vmem:[#allocation5 + $0x78] sm:$0xff]
    %v130 = vld [vmem:[#allocation5 + $0x80] sm:$0xff]
    %v131 = vld [vmem:[#allocation5 + $0x88] sm:$0xff]
    %v132 = vld [vmem:[#allocation5 + $0x90] sm:$0xff]
    %v133 = vld [vmem:[#allocation5 + $0x98] sm:$0xff]
    %v134 = vld [vmem:[#allocation5 + $0xa0] sm:$0xff]
    %v135 = vld [vmem:[#allocation5 + $0xa8] sm:$0xff]
    %v136 = vld [vmem:[#allocation5 + $0xb0] sm:$0xff]
    %v137 = vld [vmem:[#allocation5 + $0xb8] sm:$0xff]
    %v138 = vld [vmem:[#allocation5 + $0xc0] sm:$0xff]
    %v139 = vld [vmem:[#allocation5 + $0xc8] sm:$0xff]
    %v140 = vld [vmem:[#allocation5 + $0xd0] sm:$0xff]
    %v141 = vld [vmem:[#allocation5 + $0xd8] sm:$0xff]
    %v142 = vld [vmem:[#allocation5 + $0xe0] sm:$0xff]
    %v143 = vld [vmem:[#allocation5 + $0xe8] sm:$0xff]
    %v144 = vld [vmem:[#allocation5 + $0xf0] sm:$0xff]
    %v145 = vld [vmem:[#allocation5 + $0xf8] sm:$0xff]
    %v146 = vld [vmem:[#allocation5 + $0x100] sm:$0xff]
    %v147 = vld [vmem:[#allocation5 + $0x108] sm:$0xff]
    %v148 = vld [vmem:[#allocation5 + $0x110] sm:$0xff]
    %v149 = vld [vmem:[#allocation5 + $0x118] sm:$0xff]
    %v150 = vld [vmem:[#allocation5 + $0x120] sm:$0xff]
    %v151 = vld [vmem:[#allocation5 + $0x128] sm:$0xff]
    %v152 = vld [vmem:[#allocation5 + $0x130] sm:$0xff]
    %v153 = vld [vmem:[#allocation5 + $0x138] sm:$0xff]
    %v154 = vld [vmem:[#allocation5 + $0x140] sm:$0xff]
    %v155 = vld [vmem:[#allocation5 + $0x148] sm:$0xff]
    %v156 = vld [vmem:[#allocation5 + $0x150] sm:$0xff]
    %v157 = vld [vmem:[#allocation5 + $0x158] sm:$0xff]
    %v158 = vld [vmem:[#allocation5 + $0x160] sm:$0xff]
    %v159 = vld [vmem:[#allocation5 + $0x168] sm:$0xff]
    %v160 = vld [vmem:[#allocation5 + $0x170] sm:$0xff]
    %v161 = vld [vmem:[#allocation5 + $0x178] sm:$0xff]
    %v162 = vld [vmem:[#allocation5 + $0x180] sm:$0xff]
    %v163 = vld [vmem:[#allocation5 + $0x188] sm:$0xff]
    %v164 = vld [vmem:[#allocation5 + $0x190] sm:$0xff]
    %v165 = vld [vmem:[#allocation5 + $0x198] sm:$0xff]
    %v166 = vld [vmem:[#allocation5 + $0x1a0] sm:$0xff]
    %v167 = vld [vmem:[#allocation5 + $0x1a8] sm:$0xff]
    %v168 = vld [vmem:[#allocation5 + $0x1b0] sm:$0xff]
    %v169 = vld [vmem:[#allocation5 + $0x1b8] sm:$0xff]
    %v170 = vld [vmem:[#allocation5 + $0x1c0] sm:$0xff]
    %v171 = vld [vmem:[#allocation5 + $0x1c8] sm:$0xff]
    %v172 = vld [vmem:[#allocation5 + $0x1d0] sm:$0xff]
    %v173 = vld [vmem:[#allocation5 + $0x1d8] sm:$0xff]
    %v174 = vld [vmem:[#allocation5 + $0x1e0] sm:$0xff]
    %v175 = vld [vmem:[#allocation5 + $0x1e8] sm:$0xff]
    %v176 = vld [vmem:[#allocation5 + $0x1f0] sm:$0xff]
    %v177 = vld [vmem:[#allocation5 + $0x1f8] sm:$0xff]
    %v178 = vld [vmem:[#allocation5 + $0x200] sm:$0xff]
    %v179 = vld [vmem:[#allocation5 + $0x208] sm:$0xff]
    %v180 = vld [vmem:[#allocation5 + $0x210] sm:$0xff]
    %v181 = vld [vmem:[#allocation5 + $0x218] sm:$0xff]
    %v182 = vld [vmem:[#allocation5 + $0x220] sm:$0xff]
    %v183 = vld [vmem:[#allocation5 + $0x228] sm:$0xff]
    %v184 = vld [vmem:[#allocation5 + $0x230] sm:$0xff]
    %v185 = vld [vmem:[#allocation5 + $0x238] sm:$0xff]
    %v186 = vld [vmem:[#allocation5 + $0x240] sm:$0xff]
    %v187 = vld [vmem:[#allocation5 + $0x248] sm:$0xff]
    %v188 = vld [vmem:[#allocation5 + $0x250] sm:$0xff]
    %v189 = vld [vmem:[#allocation5 + $0x258] sm:$0xff]
    %v190 = vld [vmem:[#allocation5 + $0x260] sm:$0xff]
    %v191 = vld [vmem:[#allocation5 + $0x268] sm:$0xff]
    %v192 = vld [vmem:[#allocation5 + $0x270] sm:$0xff]
    %v193 = vld [vmem:[#allocation5 + $0x278] sm:$0xff]
    %v194 = vld [vmem:[#allocation5 + $0x280] sm:$0xff]
    %v195 = vld [vmem:[#allocation5 + $0x288] sm:$0xff]
    %v196 = vld [vmem:[#allocation5 + $0x290] sm:$0xff]
    %v197 = vld [vmem:[#allocation5 + $0x298] sm:$0xff]
    %v198 = vld [vmem:[#allocation5 + $0x2a0] sm:$0xff]
    %v199 = vld [vmem:[#allocation5 + $0x2a8] sm:$0xff]
    %v200 = vld [vmem:[#allocation5 + $0x2b0] sm:$0xff]
    %v201 = vld [vmem:[#allocation5 + $0x2b8] sm:$0xff]
    %v202 = vld [vmem:[#allocation5 + $0x2c0] sm:$0xff]
    %v203 = vld [vmem:[#allocation5 + $0x2c8] sm:$0xff]
    %v204 = vld [vmem:[#allocation5 + $0x2d0] sm:$0xff]
    %v205 = vld [vmem:[#allocation5 + $0x2d8] sm:$0xff]
    %v206 = vld [vmem:[#allocation5 + $0x2e0] sm:$0xff]
    %v207 = vld [vmem:[#allocation5 + $0x2e8] sm:$0xff]
    %v208 = vld [vmem:[#allocation5 + $0x2f0] sm:$0xff]
    %v209 = vld [vmem:[#allocation5 + $0x2f8] sm:$0xff]
    %v210 = vld [vmem:[#allocation5 + $0x300] sm:$0xff]
    %v211 = vld [vmem:[#allocation5 + $0x308] sm:$0xff]
    %v212 = vld [vmem:[#allocation5 + $0x310] sm:$0xff]
    %v213 = vld [vmem:[#allocation5 + $0x318] sm:$0xff]
    %v214 = vld [vmem:[#allocation5 + $0x320] sm:$0xff]
    %v215 = vld [vmem:[#allocation5 + $0x328] sm:$0xff]
    %v216 = vld [vmem:[#allocation5 + $0x330] sm:$0xff]
    %v217 = vld [vmem:[#allocation5 + $0x338] sm:$0xff]
    %v218 = vld [vmem:[#allocation5 + $0x340] sm:$0xff]
    %v219 = vld [vmem:[#allocation5 + $0x348] sm:$0xff]
    %v220 = vld [vmem:[#allocation5 + $0x350] sm:$0xff]
    %v221 = vld [vmem:[#allocation5 + $0x358] sm:$0xff]
    %v222 = vld [vmem:[#allocation5 + $0x360] sm:$0xff]
    %v223 = vld [vmem:[#allocation5 + $0x368] sm:$0xff]
    %v224 = vld [vmem:[#allocation5 + $0x370] sm:$0xff]
    %v225 = vld [vmem:[#allocation5 + $0x378] sm:$0xff]
    %v226 = vld [vmem:[#allocation5 + $0x380] sm:$0xff]
    %v227 = vld [vmem:[#allocation5 + $0x388] sm:$0xff]
    %v228 = vld [vmem:[#allocation5 + $0x390] sm:$0xff]
    %v229 = vld [vmem:[#allocation5 + $0x398] sm:$0xff]
    %v230 = vld [vmem:[#allocation5 + $0x3a0] sm:$0xff]
    %v231 = vld [vmem:[#allocation5 + $0x3a8] sm:$0xff]
    %v232 = vld [vmem:[#allocation5 + $0x3b0] sm:$0xff]
    %v233 = vld [vmem:[#allocation5 + $0x3b8] sm:$0xff]
    %v234 = vld [vmem:[#allocation5 + $0x3c0] sm:$0xff]
    %v235 = vld [vmem:[#allocation5 + $0x3c8] sm:$0xff]
    %v236 = vld [vmem:[#allocation5 + $0x3d0] sm:$0xff]
    %v237 = vld [vmem:[#allocation5 + $0x3d8] sm:$0xff]
    %v238 = vld [vmem:[#allocation5 + $0x3e0] sm:$0xff]
    %v239 = vld [vmem:[#allocation5 + $0x3e8] sm:$0xff]
    %v240 = vld [vmem:[#allocation5 + $0x3f0] sm:$0xff]
    %v241 = vld [vmem:[#allocation5 + $0x3f8] sm:$0xff]
    %v242 = vld [vmem:[#allocation5 + $0x400] sm:$0xff]
    %v243 = vld [vmem:[#allocation5 + $0x408] sm:$0xff]
    %v244 = vld [vmem:[#allocation5 + $0x410] sm:$0xff]
    %v245 = vld [vmem:[#allocation5 + $0x418] sm:$0xff]
    %v246 = vld [vmem:[#allocation5 + $0x420] sm:$0xff]
    %v247 = vld [vmem:[#allocation5 + $0x428] sm:$0xff]
    %v248 = vld [vmem:[#allocation5 + $0x430] sm:$0xff]
    %v249 = vld [vmem:[#allocation5 + $0x438] sm:$0xff]
    %v250 = vld [vmem:[#allocation5 + $0x440] sm:$0xff]
    %v251 = vld [vmem:[#allocation5 + $0x448] sm:$0xff]
    %v252 = vld [vmem:[#allocation5 + $0x450] sm:$0xff]
    %v253 = vld [vmem:[#allocation5 + $0x458] sm:$0xff]
    %v254 = vld [vmem:[#allocation5 + $0x460] sm:$0xff]
    %v255 = vld [vmem:[#allocation5 + $0x468] sm:$0xff]
    %v256 = vld [vmem:[#allocation5 + $0x470] sm:$0xff]
    %v257 = vld [vmem:[#allocation5 + $0x478] sm:$0xff]
    %v258 = vld [vmem:[#allocation5 + $0x480] sm:$0xff]
    %v259 = vld [vmem:[#allocation5 + $0x488] sm:$0xff]
    %v260 = vld [vmem:[#allocation5 + $0x490] sm:$0xff]
    %v261 = vld [vmem:[#allocation5 + $0x498] sm:$0xff]
    %v262 = vld [vmem:[#allocation5 + $0x4a0] sm:$0xff]
    %v263 = vld [vmem:[#allocation5 + $0x4a8] sm:$0xff]
    %v264 = vld [vmem:[#allocation5 + $0x4b0] sm:$0xff]
    %v265 = vld [vmem:[#allocation5 + $0x4b8] sm:$0xff]
    %v266 = vld [vmem:[#allocation5 + $0x4c0] sm:$0xff]
    %v267 = vld [vmem:[#allocation5 + $0x4c8] sm:$0xff]
    %v268 = vld [vmem:[#allocation5 + $0x4d0] sm:$0xff]
    %v269 = vld [vmem:[#allocation5 + $0x4d8] sm:$0xff]
    %v270 = vld [vmem:[#allocation5 + $0x4e0] sm:$0xff]
    %v271 = vld [vmem:[#allocation5 + $0x4e8] sm:$0xff]
    %v272 = vld [vmem:[#allocation5 + $0x4f0] sm:$0xff]
    %v273 = vld [vmem:[#allocation5 + $0x4f8] sm:$0xff]
    %v274 = vld [vmem:[#allocation5 + $0x500] sm:$0xff]
    %v275 = vld [vmem:[#allocation5 + $0x508] sm:$0xff]
    %v276 = vld [vmem:[#allocation5 + $0x510] sm:$0xff]
    %v277 = vld [vmem:[#allocation5 + $0x518] sm:$0xff]
    %v278 = vld [vmem:[#allocation5 + $0x520] sm:$0xff]
    %v279 = vld [vmem:[#allocation5 + $0x528] sm:$0xff]
    %v280 = vld [vmem:[#allocation5 + $0x530] sm:$0xff]
    %v281 = vld [vmem:[#allocation5 + $0x538] sm:$0xff]
    %v282 = vld [vmem:[#allocation5 + $0x540] sm:$0xff]
    %v283 = vld [vmem:[#allocation5 + $0x548] sm:$0xff]
    %v284 = vld [vmem:[#allocation5 + $0x550] sm:$0xff]
    %v285 = vld [vmem:[#allocation5 + $0x558] sm:$0xff]
    %v286 = vld [vmem:[#allocation5 + $0x560] sm:$0xff]
    %v287 = vld [vmem:[#allocation5 + $0x568] sm:$0xff]
    %v288 = vld [vmem:[#allocation5 + $0x570] sm:$0xff]
    %v289 = vld [vmem:[#allocation5 + $0x578] sm:$0xff]
    %v290 = vld [vmem:[#allocation5 + $0x580] sm:$0xff]
    %v291 = vld [vmem:[#allocation5 + $0x588] sm:$0xff]
    %v292 = vld [vmem:[#allocation5 + $0x590] sm:$0xff]
    %v293 = vld [vmem:[#allocation5 + $0x598] sm:$0xff]
    %v294 = vld [vmem:[#allocation5 + $0x5a0] sm:$0xff]
    %v295 = vld [vmem:[#allocation5 + $0x5a8] sm:$0xff]
    %v296 = vld [vmem:[#allocation5 + $0x5b0] sm:$0xff]
    %v297 = vld [vmem:[#allocation5 + $0x5b8] sm:$0xff]
    %v298 = vld [vmem:[#allocation5 + $0x5c0] sm:$0xff]
    %v299 = vld [vmem:[#allocation5 + $0x5c8] sm:$0xff]
    %v300 = vld [vmem:[#allocation5 + $0x5d0] sm:$0xff]
    %v301 = vld [vmem:[#allocation5 + $0x5d8] sm:$0xff]
    %v302 = vld [vmem:[#allocation5 + $0x5e0] sm:$0xff]
    %v303 = vld [vmem:[#allocation5 + $0x5e8] sm:$0xff]
    %v304 = vld [vmem:[#allocation5 + $0x5f0] sm:$0xff]
    %v305 = vld [vmem:[#allocation5 + $0x5f8] sm:$0xff]
    %v306 = vld [vmem:[#allocation5 + $0x600] sm:$0xff]
    %v307 = vld [vmem:[#allocation5 + $0x608] sm:$0xff]
    %v308 = vld [vmem:[#allocation5 + $0x610] sm:$0xff]
    %v309 = vld [vmem:[#allocation5 + $0x618] sm:$0xff]
    %v310 = vld [vmem:[#allocation5 + $0x620] sm:$0xff]
    %v311 = vld [vmem:[#allocation5 + $0x628] sm:$0xff]
    %v312 = vld [vmem:[#allocation5 + $0x630] sm:$0xff]
    %v313 = vld [vmem:[#allocation5 + $0x638] sm:$0xff]
    %v314 = vld [vmem:[#allocation5 + $0x640] sm:$0xff]
    %v315 = vld [vmem:[#allocation5 + $0x648] sm:$0xff]
    %v316 = vld [vmem:[#allocation5 + $0x650] sm:$0xff]
    %v317 = vld [vmem:[#allocation5 + $0x658] sm:$0xff]
    %v318 = vld [vmem:[#allocation5 + $0x660] sm:$0xff]
    %v319 = vld [vmem:[#allocation5 + $0x668] sm:$0xff]
    %v320 = vld [vmem:[#allocation5 + $0x670] sm:$0xff]
    %v321 = vld [vmem:[#allocation5 + $0x678] sm:$0xff]
    %v322 = vld [vmem:[#allocation5 + $0x680] sm:$0xff]
    %v323 = vld [vmem:[#allocation5 + $0x688] sm:$0xff]
    %v324 = vld [vmem:[#allocation5 + $0x690] sm:$0xff]
    %v325 = vld [vmem:[#allocation5 + $0x698] sm:$0xff]
    %v326 = vld [vmem:[#allocation5 + $0x6a0] sm:$0xff]
    %v327 = vld [vmem:[#allocation5 + $0x6a8] sm:$0xff]
    %v328 = vld [vmem:[#allocation5 + $0x6b0] sm:$0xff]
    %v329 = vld [vmem:[#allocation5 + $0x6b8] sm:$0xff]
    %v330 = vld [vmem:[#allocation5 + $0x6c0] sm:$0xff]
    %v331 = vld [vmem:[#allocation5 + $0x6c8] sm:$0xff]
    %v332 = vld [vmem:[#allocation5 + $0x6d0] sm:$0xff]
    %v333 = vld [vmem:[#allocation5 + $0x6d8] sm:$0xff]
    %v334 = vld [vmem:[#allocation5 + $0x6e0] sm:$0xff]
    %v335 = vld [vmem:[#allocation5 + $0x6e8] sm:$0xff]
    %v336 = vld [vmem:[#allocation5 + $0x6f0] sm:$0xff]
    %v337 = vld [vmem:[#allocation5 + $0x6f8] sm:$0xff]
    %v338 = vld [vmem:[#allocation5 + $0x700] sm:$0xff]
    %v339 = vld [vmem:[#allocation5 + $0x708] sm:$0xff]
    %v340 = vld [vmem:[#allocation5 + $0x710] sm:$0xff]
    %v341 = vld [vmem:[#allocation5 + $0x718] sm:$0xff]
    %v342 = vld [vmem:[#allocation5 + $0x720] sm:$0xff]
    %v343 = vld [vmem:[#allocation5 + $0x728] sm:$0xff]
    %v344 = vld [vmem:[#allocation5 + $0x730] sm:$0xff]
    %v345 = vld [vmem:[#allocation5 + $0x738] sm:$0xff]
    %v346 = vld [vmem:[#allocation5 + $0x740] sm:$0xff]
    %v347 = vld [vmem:[#allocation5 + $0x748] sm:$0xff]
    %v348 = vld [vmem:[#allocation5 + $0x750] sm:$0xff]
    %v349 = vld [vmem:[#allocation5 + $0x758] sm:$0xff]
    %v350 = vld [vmem:[#allocation5 + $0x760] sm:$0xff]
    %v351 = vld [vmem:[#allocation5 + $0x768] sm:$0xff]
    %v352 = vld [vmem:[#allocation5 + $0x770] sm:$0xff]
    %v353 = vld [vmem:[#allocation5 + $0x778] sm:$0xff]
    %v354 = vld [vmem:[#allocation5 + $0x780] sm:$0xff]
    %v355 = vld [vmem:[#allocation5 + $0x788] sm:$0xff]
    %v356 = vld [vmem:[#allocation5 + $0x790] sm:$0xff]
    %v357 = vld [vmem:[#allocation5 + $0x798] sm:$0xff]
    %v358 = vld [vmem:[#allocation5 + $0x7a0] sm:$0xff]
    %v359 = vld [vmem:[#allocation5 + $0x7a8] sm:$0xff]
    %v360 = vld [vmem:[#allocation5 + $0x7b0] sm:$0xff]
    %v361 = vld [vmem:[#allocation5 + $0x7b8] sm:$0xff]
    %v362 = vld [vmem:[#allocation5 + $0x7c0] sm:$0xff]
    %v363 = vld [vmem:[#allocation5 + $0x7c8] sm:$0xff]
    %v364 = vld [vmem:[#allocation5 + $0x7d0] sm:$0xff]
    %v365 = vld [vmem:[#allocation5 + $0x7d8] sm:$0xff]
    %v366 = vld [vmem:[#allocation5 + $0x7e0] sm:$0xff]
    %v367 = vld [vmem:[#allocation5 + $0x7e8] sm:$0xff]
    %v368 = vld [vmem:[#allocation5 + $0x7f0] sm:$0xff]
    %v369 = vld [vmem:[#allocation5 + $0x7f8] sm:$0xff]
    %v370 = vld [vmem:[#allocation7] sm:$0xf]
    %v372 = vlaneseq
    %v373 = vshrl.u32 %v372, 7
    %v374 = vsub.s32 0, %v373
    %v375 = vrot.slane %v370, %v374
    %v376 = vlaneseq
    %v377 = vshrl.u32 %v376, 7
    %v378 = vsub.s32 1, %v377
    %v379 = vrot.slane %v370, %v378
    %v380 = vlaneseq
    %v381 = vshrl.u32 %v380, 7
    %v382 = vsub.s32 2, %v381
    %v383 = vrot.slane %v370, %v382
    %v384 = vlaneseq
    %v385 = vshrl.u32 %v384, 7
    %v386 = vsub.s32 3, %v385
    %v387 = vrot.slane %v370, %v386
    %v648 = vunpack.c.l.b16 %v114
    %v649 = vunpack.c.h.b16 %v114
    %v650 = vunpack.c.l.b16 %v115
    %v651 = vunpack.c.h.b16 %v115
    %v652 = vunpack.c.l.b16 %v116
    %v653 = vunpack.c.h.b16 %v116
    %v654 = vunpack.c.l.b16 %v117
    %v655 = vunpack.c.h.b16 %v117
    %v656 = vunpack.c.l.b16 %v118
    %v657 = vunpack.c.h.b16 %v118
    %v658 = vunpack.c.l.b16 %v119
    %v659 = vunpack.c.h.b16 %v119
    %v660 = vunpack.c.l.b16 %v120
    %v661 = vunpack.c.h.b16 %v120
    %v662 = vunpack.c.l.b16 %v121
    %v663 = vunpack.c.h.b16 %v121
    %v664 = vunpack.c.l.b16 %v122
    %v665 = vunpack.c.h.b16 %v122
    %v666 = vunpack.c.l.b16 %v123
    %v667 = vunpack.c.h.b16 %v123
    %v668 = vunpack.c.l.b16 %v124
    %v669 = vunpack.c.h.b16 %v124
    %v670 = vunpack.c.l.b16 %v125
    %v671 = vunpack.c.h.b16 %v125
    %v672 = vunpack.c.l.b16 %v126
    %v673 = vunpack.c.h.b16 %v126
    %v674 = vunpack.c.l.b16 %v127
    %v675 = vunpack.c.h.b16 %v127
    %v676 = vunpack.c.l.b16 %v128
    %v677 = vunpack.c.h.b16 %v128
    %v678 = vunpack.c.l.b16 %v129
    %v679 = vunpack.c.h.b16 %v129
    %v680 = vunpack.c.l.b16 %v130
    %v681 = vunpack.c.h.b16 %v130
    %v682 = vunpack.c.l.b16 %v131
    %v683 = vunpack.c.h.b16 %v131
    %v684 = vunpack.c.l.b16 %v132
    %v685 = vunpack.c.h.b16 %v132
    %v686 = vunpack.c.l.b16 %v133
    %v687 = vunpack.c.h.b16 %v133
    %v688 = vunpack.c.l.b16 %v134
    %v689 = vunpack.c.h.b16 %v134
    %v690 = vunpack.c.l.b16 %v135
    %v691 = vunpack.c.h.b16 %v135
    %v692 = vunpack.c.l.b16 %v136
    %v693 = vunpack.c.h.b16 %v136
    %v694 = vunpack.c.l.b16 %v137
    %v695 = vunpack.c.h.b16 %v137
    %v696 = vunpack.c.l.b16 %v138
    %v697 = vunpack.c.h.b16 %v138
    %v698 = vunpack.c.l.b16 %v139
    %v699 = vunpack.c.h.b16 %v139
    %v700 = vunpack.c.l.b16 %v140
    %v701 = vunpack.c.h.b16 %v140
    %v702 = vunpack.c.l.b16 %v141
    %v703 = vunpack.c.h.b16 %v141
    %v704 = vunpack.c.l.b16 %v142
    %v705 = vunpack.c.h.b16 %v142
    %v706 = vunpack.c.l.b16 %v143
    %v707 = vunpack.c.h.b16 %v143
    %v708 = vunpack.c.l.b16 %v144
    %v709 = vunpack.c.h.b16 %v144
    %v710 = vunpack.c.l.b16 %v145
    %v711 = vunpack.c.h.b16 %v145
    %v712 = vunpack.c.l.b16 %v146
    %v713 = vunpack.c.h.b16 %v146
    %v714 = vunpack.c.l.b16 %v147
    %v715 = vunpack.c.h.b16 %v147
    %v716 = vunpack.c.l.b16 %v148
    %v717 = vunpack.c.h.b16 %v148
    %v718 = vunpack.c.l.b16 %v149
    %v719 = vunpack.c.h.b16 %v149
    %v720 = vunpack.c.l.b16 %v150
    %v721 = vunpack.c.h.b16 %v150
    %v722 = vunpack.c.l.b16 %v151
    %v723 = vunpack.c.h.b16 %v151
    %v724 = vunpack.c.l.b16 %v152
    %v725 = vunpack.c.h.b16 %v152
    %v726 = vunpack.c.l.b16 %v153
    %v727 = vunpack.c.h.b16 %v153
    %v728 = vunpack.c.l.b16 %v154
    %v729 = vunpack.c.h.b16 %v154
    %v730 = vunpack.c.l.b16 %v155
    %v731 = vunpack.c.h.b16 %v155
    %v732 = vunpack.c.l.b16 %v156
    %v733 = vunpack.c.h.b16 %v156
    %v734 = vunpack.c.l.b16 %v157
    %v735 = vunpack.c.h.b16 %v157
    %v736 = vunpack.c.l.b16 %v158
    %v737 = vunpack.c.h.b16 %v158
    %v738 = vunpack.c.l.b16 %v159
    %v739 = vunpack.c.h.b16 %v159
    %v740 = vunpack.c.l.b16 %v160
    %v741 = vunpack.c.h.b16 %v160
    %v742 = vunpack.c.l.b16 %v161
    %v743 = vunpack.c.h.b16 %v161
    %v744 = vunpack.c.l.b16 %v162
    %v745 = vunpack.c.h.b16 %v162
    %v746 = vunpack.c.l.b16 %v163
    %v747 = vunpack.c.h.b16 %v163
    %v748 = vunpack.c.l.b16 %v164
    %v749 = vunpack.c.h.b16 %v164
    %v750 = vunpack.c.l.b16 %v165
    %v751 = vunpack.c.h.b16 %v165
    %v752 = vunpack.c.l.b16 %v166
    %v753 = vunpack.c.h.b16 %v166
    %v754 = vunpack.c.l.b16 %v167
    %v755 = vunpack.c.h.b16 %v167
    %v756 = vunpack.c.l.b16 %v168
    %v757 = vunpack.c.h.b16 %v168
    %v758 = vunpack.c.l.b16 %v169
    %v759 = vunpack.c.h.b16 %v169
    %v760 = vunpack.c.l.b16 %v170
    %v761 = vunpack.c.h.b16 %v170
    %v762 = vunpack.c.l.b16 %v171
    %v763 = vunpack.c.h.b16 %v171
    %v764 = vunpack.c.l.b16 %v172
    %v765 = vunpack.c.h.b16 %v172
    %v766 = vunpack.c.l.b16 %v173
    %v767 = vunpack.c.h.b16 %v173
    %v768 = vunpack.c.l.b16 %v174
    %v769 = vunpack.c.h.b16 %v174
    %v770 = vunpack.c.l.b16 %v175
    %v771 = vunpack.c.h.b16 %v175
    %v772 = vunpack.c.l.b16 %v176
    %v773 = vunpack.c.h.b16 %v176
    %v774 = vunpack.c.l.b16 %v177
    %v775 = vunpack.c.h.b16 %v177
    %v776 = vunpack.c.l.b16 %v178
    %v777 = vunpack.c.h.b16 %v178
    %v778 = vunpack.c.l.b16 %v179
    %v779 = vunpack.c.h.b16 %v179
    %v780 = vunpack.c.l.b16 %v180
    %v781 = vunpack.c.h.b16 %v180
    %v782 = vunpack.c.l.b16 %v181
    %v783 = vunpack.c.h.b16 %v181
    %v784 = vunpack.c.l.b16 %v182
    %v785 = vunpack.c.h.b16 %v182
    %v786 = vunpack.c.l.b16 %v183
    %v787 = vunpack.c.h.b16 %v183
    %v788 = vunpack.c.l.b16 %v184
    %v789 = vunpack.c.h.b16 %v184
    %v790 = vunpack.c.l.b16 %v185
    %v791 = vunpack.c.h.b16 %v185
    %v792 = vunpack.c.l.b16 %v186
    %v793 = vunpack.c.h.b16 %v186
    %v794 = vunpack.c.l.b16 %v187
    %v795 = vunpack.c.h.b16 %v187
    %v796 = vunpack.c.l.b16 %v188
    %v797 = vunpack.c.h.b16 %v188
    %v798 = vunpack.c.l.b16 %v189
    %v799 = vunpack.c.h.b16 %v189
    %v800 = vunpack.c.l.b16 %v190
    %v801 = vunpack.c.h.b16 %v190
    %v802 = vunpack.c.l.b16 %v191
    %v803 = vunpack.c.h.b16 %v191
    %v804 = vunpack.c.l.b16 %v192
    %v805 = vunpack.c.h.b16 %v192
    %v806 = vunpack.c.l.b16 %v193
    %v807 = vunpack.c.h.b16 %v193
    %v808 = vunpack.c.l.b16 %v194
    %v809 = vunpack.c.h.b16 %v194
    %v810 = vunpack.c.l.b16 %v195
    %v811 = vunpack.c.h.b16 %v195
    %v812 = vunpack.c.l.b16 %v196
    %v813 = vunpack.c.h.b16 %v196
    %v814 = vunpack.c.l.b16 %v197
    %v815 = vunpack.c.h.b16 %v197
    %v816 = vunpack.c.l.b16 %v198
    %v817 = vunpack.c.h.b16 %v198
    %v818 = vunpack.c.l.b16 %v199
    %v819 = vunpack.c.h.b16 %v199
    %v820 = vunpack.c.l.b16 %v200
    %v821 = vunpack.c.h.b16 %v200
    %v822 = vunpack.c.l.b16 %v201
    %v823 = vunpack.c.h.b16 %v201
    %v824 = vunpack.c.l.b16 %v202
    %v825 = vunpack.c.h.b16 %v202
    %v826 = vunpack.c.l.b16 %v203
    %v827 = vunpack.c.h.b16 %v203
    %v828 = vunpack.c.l.b16 %v204
    %v829 = vunpack.c.h.b16 %v204
    %v830 = vunpack.c.l.b16 %v205
    %v831 = vunpack.c.h.b16 %v205
    %v832 = vunpack.c.l.b16 %v206
    %v833 = vunpack.c.h.b16 %v206
    %v834 = vunpack.c.l.b16 %v207
    %v835 = vunpack.c.h.b16 %v207
    %v836 = vunpack.c.l.b16 %v208
    %v837 = vunpack.c.h.b16 %v208
    %v838 = vunpack.c.l.b16 %v209
    %v839 = vunpack.c.h.b16 %v209
    %v840 = vunpack.c.l.b16 %v210
    %v841 = vunpack.c.h.b16 %v210
    %v842 = vunpack.c.l.b16 %v211
    %v843 = vunpack.c.h.b16 %v211
    %v844 = vunpack.c.l.b16 %v212
    %v845 = vunpack.c.h.b16 %v212
    %v846 = vunpack.c.l.b16 %v213
    %v847 = vunpack.c.h.b16 %v213
    %v848 = vunpack.c.l.b16 %v214
    %v849 = vunpack.c.h.b16 %v214
    %v850 = vunpack.c.l.b16 %v215
    %v851 = vunpack.c.h.b16 %v215
    %v852 = vunpack.c.l.b16 %v216
    %v853 = vunpack.c.h.b16 %v216
    %v854 = vunpack.c.l.b16 %v217
    %v855 = vunpack.c.h.b16 %v217
    %v856 = vunpack.c.l.b16 %v218
    %v857 = vunpack.c.h.b16 %v218
    %v858 = vunpack.c.l.b16 %v219
    %v859 = vunpack.c.h.b16 %v219
    %v860 = vunpack.c.l.b16 %v220
    %v861 = vunpack.c.h.b16 %v220
    %v862 = vunpack.c.l.b16 %v221
    %v863 = vunpack.c.h.b16 %v221
    %v864 = vunpack.c.l.b16 %v222
    %v865 = vunpack.c.h.b16 %v222
    %v866 = vunpack.c.l.b16 %v223
    %v867 = vunpack.c.h.b16 %v223
    %v868 = vunpack.c.l.b16 %v224
    %v869 = vunpack.c.h.b16 %v224
    %v870 = vunpack.c.l.b16 %v225
    %v871 = vunpack.c.h.b16 %v225
    %v872 = vunpack.c.l.b16 %v226
    %v873 = vunpack.c.h.b16 %v226
    %v874 = vunpack.c.l.b16 %v227
    %v875 = vunpack.c.h.b16 %v227
    %v876 = vunpack.c.l.b16 %v228
    %v877 = vunpack.c.h.b16 %v228
    %v878 = vunpack.c.l.b16 %v229
    %v879 = vunpack.c.h.b16 %v229
    %v880 = vunpack.c.l.b16 %v230
    %v881 = vunpack.c.h.b16 %v230
    %v882 = vunpack.c.l.b16 %v231
    %v883 = vunpack.c.h.b16 %v231
    %v884 = vunpack.c.l.b16 %v232
    %v885 = vunpack.c.h.b16 %v232
    %v886 = vunpack.c.l.b16 %v233
    %v887 = vunpack.c.h.b16 %v233
    %v888 = vunpack.c.l.b16 %v234
    %v889 = vunpack.c.h.b16 %v234
    %v890 = vunpack.c.l.b16 %v235
    %v891 = vunpack.c.h.b16 %v235
    %v892 = vunpack.c.l.b16 %v236
    %v893 = vunpack.c.h.b16 %v236
    %v894 = vunpack.c.l.b16 %v237
    %v895 = vunpack.c.h.b16 %v237
    %v896 = vunpack.c.l.b16 %v238
    %v897 = vunpack.c.h.b16 %v238
    %v898 = vunpack.c.l.b16 %v239
    %v899 = vunpack.c.h.b16 %v239
    %v900 = vunpack.c.l.b16 %v240
    %v901 = vunpack.c.h.b16 %v240
    %v902 = vunpack.c.l.b16 %v241
    %v903 = vunpack.c.h.b16 %v241
    %v904 = vunpack.c.l.b16 %v242
    %v905 = vunpack.c.h.b16 %v242
    %v906 = vunpack.c.l.b16 %v243
    %v907 = vunpack.c.h.b16 %v243
    %v908 = vunpack.c.l.b16 %v244
    %v909 = vunpack.c.h.b16 %v244
    %v910 = vunpack.c.l.b16 %v245
    %v911 = vunpack.c.h.b16 %v245
    %v912 = vunpack.c.l.b16 %v246
    %v913 = vunpack.c.h.b16 %v246
    %v914 = vunpack.c.l.b16 %v247
    %v915 = vunpack.c.h.b16 %v247
    %v916 = vunpack.c.l.b16 %v248
    %v917 = vunpack.c.h.b16 %v248
    %v918 = vunpack.c.l.b16 %v249
    %v919 = vunpack.c.h.b16 %v249
    %v920 = vunpack.c.l.b16 %v250
    %v921 = vunpack.c.h.b16 %v250
    %v922 = vunpack.c.l.b16 %v251
    %v923 = vunpack.c.h.b16 %v251
    %v924 = vunpack.c.l.b16 %v252
    %v925 = vunpack.c.h.b16 %v252
    %v926 = vunpack.c.l.b16 %v253
    %v927 = vunpack.c.h.b16 %v253
    %v928 = vunpack.c.l.b16 %v254
    %v929 = vunpack.c.h.b16 %v254
    %v930 = vunpack.c.l.b16 %v255
    %v931 = vunpack.c.h.b16 %v255
    %v932 = vunpack.c.l.b16 %v256
    %v933 = vunpack.c.h.b16 %v256
    %v934 = vunpack.c.l.b16 %v257
    %v935 = vunpack.c.h.b16 %v257
    %v936 = vunpack.c.l.b16 %v258
    %v937 = vunpack.c.h.b16 %v258
    %v938 = vunpack.c.l.b16 %v259
    %v939 = vunpack.c.h.b16 %v259
    %v940 = vunpack.c.l.b16 %v260
    %v941 = vunpack.c.h.b16 %v260
    %v942 = vunpack.c.l.b16 %v261
    %v943 = vunpack.c.h.b16 %v261
    %v944 = vunpack.c.l.b16 %v262
    %v945 = vunpack.c.h.b16 %v262
    %v946 = vunpack.c.l.b16 %v263
    %v947 = vunpack.c.h.b16 %v263
    %v948 = vunpack.c.l.b16 %v264
    %v949 = vunpack.c.h.b16 %v264
    %v950 = vunpack.c.l.b16 %v265
    %v951 = vunpack.c.h.b16 %v265
    %v952 = vunpack.c.l.b16 %v266
    %v953 = vunpack.c.h.b16 %v266
    %v954 = vunpack.c.l.b16 %v267
    %v955 = vunpack.c.h.b16 %v267
    %v956 = vunpack.c.l.b16 %v268
    %v957 = vunpack.c.h.b16 %v268
    %v958 = vunpack.c.l.b16 %v269
    %v959 = vunpack.c.h.b16 %v269
    %v960 = vunpack.c.l.b16 %v270
    %v961 = vunpack.c.h.b16 %v270
    %v962 = vunpack.c.l.b16 %v271
    %v963 = vunpack.c.h.b16 %v271
    %v964 = vunpack.c.l.b16 %v272
    %v965 = vunpack.c.h.b16 %v272
    %v966 = vunpack.c.l.b16 %v273
    %v967 = vunpack.c.h.b16 %v273
    %v968 = vunpack.c.l.b16 %v274
    %v969 = vunpack.c.h.b16 %v274
    %v970 = vunpack.c.l.b16 %v275
    %v971 = vunpack.c.h.b16 %v275
    %v972 = vunpack.c.l.b16 %v276
    %v973 = vunpack.c.h.b16 %v276
    %v974 = vunpack.c.l.b16 %v277
    %v975 = vunpack.c.h.b16 %v277
    %v976 = vunpack.c.l.b16 %v278
    %v977 = vunpack.c.h.b16 %v278
    %v978 = vunpack.c.l.b16 %v279
    %v979 = vunpack.c.h.b16 %v279
    %v980 = vunpack.c.l.b16 %v280
    %v981 = vunpack.c.h.b16 %v280
    %v982 = vunpack.c.l.b16 %v281
    %v983 = vunpack.c.h.b16 %v281
    %v984 = vunpack.c.l.b16 %v282
    %v985 = vunpack.c.h.b16 %v282
    %v986 = vunpack.c.l.b16 %v283
    %v987 = vunpack.c.h.b16 %v283
    %v988 = vunpack.c.l.b16 %v284
    %v989 = vunpack.c.h.b16 %v284
    %v990 = vunpack.c.l.b16 %v285
    %v991 = vunpack.c.h.b16 %v285
    %v992 = vunpack.c.l.b16 %v286
    %v993 = vunpack.c.h.b16 %v286
    %v994 = vunpack.c.l.b16 %v287
    %v995 = vunpack.c.h.b16 %v287
    %v996 = vunpack.c.l.b16 %v288
    %v997 = vunpack.c.h.b16 %v288
    %v998 = vunpack.c.l.b16 %v289
    %v999 = vunpack.c.h.b16 %v289
    %v1000 = vunpack.c.l.b16 %v290
    %v1001 = vunpack.c.h.b16 %v290
    %v1002 = vunpack.c.l.b16 %v291
    %v1003 = vunpack.c.h.b16 %v291
    %v1004 = vunpack.c.l.b16 %v292
    %v1005 = vunpack.c.h.b16 %v292
    %v1006 = vunpack.c.l.b16 %v293
    %v1007 = vunpack.c.h.b16 %v293
    %v1008 = vunpack.c.l.b16 %v294
    %v1009 = vunpack.c.h.b16 %v294
    %v1010 = vunpack.c.l.b16 %v295
    %v1011 = vunpack.c.h.b16 %v295
    %v1012 = vunpack.c.l.b16 %v296
    %v1013 = vunpack.c.h.b16 %v296
    %v1014 = vunpack.c.l.b16 %v297
    %v1015 = vunpack.c.h.b16 %v297
    %v1016 = vunpack.c.l.b16 %v298
    %v1017 = vunpack.c.h.b16 %v298
    %v1018 = vunpack.c.l.b16 %v299
    %v1019 = vunpack.c.h.b16 %v299
    %v1020 = vunpack.c.l.b16 %v300
    %v1021 = vunpack.c.h.b16 %v300
    %v1022 = vunpack.c.l.b16 %v301
    %v1023 = vunpack.c.h.b16 %v301
    %v1024 = vunpack.c.l.b16 %v302
    %v1025 = vunpack.c.h.b16 %v302
    %v1026 = vunpack.c.l.b16 %v303
    %v1027 = vunpack.c.h.b16 %v303
    %v1028 = vunpack.c.l.b16 %v304
    %v1029 = vunpack.c.h.b16 %v304
    %v1030 = vunpack.c.l.b16 %v305
    %v1031 = vunpack.c.h.b16 %v305
    %v1032 = vunpack.c.l.b16 %v306
    %v1033 = vunpack.c.h.b16 %v306
    %v1034 = vunpack.c.l.b16 %v307
    %v1035 = vunpack.c.h.b16 %v307
    %v1036 = vunpack.c.l.b16 %v308
    %v1037 = vunpack.c.h.b16 %v308
    %v1038 = vunpack.c.l.b16 %v309
    %v1039 = vunpack.c.h.b16 %v309
    %v1040 = vunpack.c.l.b16 %v310
    %v1041 = vunpack.c.h.b16 %v310
    %v1042 = vunpack.c.l.b16 %v311
    %v1043 = vunpack.c.h.b16 %v311
    %v1044 = vunpack.c.l.b16 %v312
    %v1045 = vunpack.c.h.b16 %v312
    %v1046 = vunpack.c.l.b16 %v313
    %v1047 = vunpack.c.h.b16 %v313
    %v1048 = vunpack.c.l.b16 %v314
    %v1049 = vunpack.c.h.b16 %v314
    %v1050 = vunpack.c.l.b16 %v315
    %v1051 = vunpack.c.h.b16 %v315
    %v1052 = vunpack.c.l.b16 %v316
    %v1053 = vunpack.c.h.b16 %v316
    %v1054 = vunpack.c.l.b16 %v317
    %v1055 = vunpack.c.h.b16 %v317
    %v1056 = vunpack.c.l.b16 %v318
    %v1057 = vunpack.c.h.b16 %v318
    %v1058 = vunpack.c.l.b16 %v319
    %v1059 = vunpack.c.h.b16 %v319
    %v1060 = vunpack.c.l.b16 %v320
    %v1061 = vunpack.c.h.b16 %v320
    %v1062 = vunpack.c.l.b16 %v321
    %v1063 = vunpack.c.h.b16 %v321
    %v1064 = vunpack.c.l.b16 %v322
    %v1065 = vunpack.c.h.b16 %v322
    %v1066 = vunpack.c.l.b16 %v323
    %v1067 = vunpack.c.h.b16 %v323
    %v1068 = vunpack.c.l.b16 %v324
    %v1069 = vunpack.c.h.b16 %v324
    %v1070 = vunpack.c.l.b16 %v325
    %v1071 = vunpack.c.h.b16 %v325
    %v1072 = vunpack.c.l.b16 %v326
    %v1073 = vunpack.c.h.b16 %v326
    %v1074 = vunpack.c.l.b16 %v327
    %v1075 = vunpack.c.h.b16 %v327
    %v1076 = vunpack.c.l.b16 %v328
    %v1077 = vunpack.c.h.b16 %v328
    %v1078 = vunpack.c.l.b16 %v329
    %v1079 = vunpack.c.h.b16 %v329
    %v1080 = vunpack.c.l.b16 %v330
    %v1081 = vunpack.c.h.b16 %v330
    %v1082 = vunpack.c.l.b16 %v331
    %v1083 = vunpack.c.h.b16 %v331
    %v1084 = vunpack.c.l.b16 %v332
    %v1085 = vunpack.c.h.b16 %v332
    %v1086 = vunpack.c.l.b16 %v333
    %v1087 = vunpack.c.h.b16 %v333
    %v1088 = vunpack.c.l.b16 %v334
    %v1089 = vunpack.c.h.b16 %v334
    %v1090 = vunpack.c.l.b16 %v335
    %v1091 = vunpack.c.h.b16 %v335
    %v1092 = vunpack.c.l.b16 %v336
    %v1093 = vunpack.c.h.b16 %v336
    %v1094 = vunpack.c.l.b16 %v337
    %v1095 = vunpack.c.h.b16 %v337
    %v1096 = vunpack.c.l.b16 %v338
    %v1097 = vunpack.c.h.b16 %v338
    %v1098 = vunpack.c.l.b16 %v339
    %v1099 = vunpack.c.h.b16 %v339
    %v1100 = vunpack.c.l.b16 %v340
    %v1101 = vunpack.c.h.b16 %v340
    %v1102 = vunpack.c.l.b16 %v341
    %v1103 = vunpack.c.h.b16 %v341
    %v1104 = vunpack.c.l.b16 %v342
    %v1105 = vunpack.c.h.b16 %v342
    %v1106 = vunpack.c.l.b16 %v343
    %v1107 = vunpack.c.h.b16 %v343
    %v1108 = vunpack.c.l.b16 %v344
    %v1109 = vunpack.c.h.b16 %v344
    %v1110 = vunpack.c.l.b16 %v345
    %v1111 = vunpack.c.h.b16 %v345
    %v1112 = vunpack.c.l.b16 %v346
    %v1113 = vunpack.c.h.b16 %v346
    %v1114 = vunpack.c.l.b16 %v347
    %v1115 = vunpack.c.h.b16 %v347
    %v1116 = vunpack.c.l.b16 %v348
    %v1117 = vunpack.c.h.b16 %v348
    %v1118 = vunpack.c.l.b16 %v349
    %v1119 = vunpack.c.h.b16 %v349
    %v1120 = vunpack.c.l.b16 %v350
    %v1121 = vunpack.c.h.b16 %v350
    %v1122 = vunpack.c.l.b16 %v351
    %v1123 = vunpack.c.h.b16 %v351
    %v1124 = vunpack.c.l.b16 %v352
    %v1125 = vunpack.c.h.b16 %v352
    %v1126 = vunpack.c.l.b16 %v353
    %v1127 = vunpack.c.h.b16 %v353
    %v1128 = vunpack.c.l.b16 %v354
    %v1129 = vunpack.c.h.b16 %v354
    %v1130 = vunpack.c.l.b16 %v355
    %v1131 = vunpack.c.h.b16 %v355
    %v1132 = vunpack.c.l.b16 %v356
    %v1133 = vunpack.c.h.b16 %v356
    %v1134 = vunpack.c.l.b16 %v357
    %v1135 = vunpack.c.h.b16 %v357
    %v1136 = vunpack.c.l.b16 %v358
    %v1137 = vunpack.c.h.b16 %v358
    %v1138 = vunpack.c.l.b16 %v359
    %v1139 = vunpack.c.h.b16 %v359
    %v1140 = vunpack.c.l.b16 %v360
    %v1141 = vunpack.c.h.b16 %v360
    %v1142 = vunpack.c.l.b16 %v361
    %v1143 = vunpack.c.h.b16 %v361
    %v1144 = vunpack.c.l.b16 %v362
    %v1145 = vunpack.c.h.b16 %v362
    %v1146 = vunpack.c.l.b16 %v363
    %v1147 = vunpack.c.h.b16 %v363
    %v1148 = vunpack.c.l.b16 %v364
    %v1149 = vunpack.c.h.b16 %v364
    %v1150 = vunpack.c.l.b16 %v365
    %v1151 = vunpack.c.h.b16 %v365
    %v1152 = vunpack.c.l.b16 %v366
    %v1153 = vunpack.c.h.b16 %v366
    %v1154 = vunpack.c.l.b16 %v367
    %v1155 = vunpack.c.h.b16 %v367
    %v1156 = vunpack.c.l.b16 %v368
    %v1157 = vunpack.c.h.b16 %v368
    %v1158 = vunpack.c.l.b16 %v369
    %v1159 = vunpack.c.h.b16 %v369
    %v1160 = vpack.c.b16 %v652, %v648
    %v1161 = vpack.c.b16 %v653, %v649
    %v1162 = vpack.c.b16 %v654, %v650
    %v1163 = vpack.c.b16 %v655, %v651
    %v1164 = vpack.c.b16 %v660, %v656
    %v1165 = vpack.c.b16 %v661, %v657
    %v1166 = vpack.c.b16 %v662, %v658
    %v1167 = vpack.c.b16 %v663, %v659
    %v1168 = vpack.c.b16 %v668, %v664
    %v1169 = vpack.c.b16 %v669, %v665
    %v1170 = vpack.c.b16 %v670, %v666
    %v1171 = vpack.c.b16 %v671, %v667
    %v1172 = vpack.c.b16 %v676, %v672
    %v1173 = vpack.c.b16 %v677, %v673
    %v1174 = vpack.c.b16 %v678, %v674
    %v1175 = vpack.c.b16 %v679, %v675
    %v1176 = vpack.c.b16 %v684, %v680
    %v1177 = vpack.c.b16 %v685, %v681
    %v1178 = vpack.c.b16 %v686, %v682
    %v1179 = vpack.c.b16 %v687, %v683
    %v1180 = vpack.c.b16 %v692, %v688
    %v1181 = vpack.c.b16 %v693, %v689
    %v1182 = vpack.c.b16 %v694, %v690
    %v1183 = vpack.c.b16 %v695, %v691
    %v1184 = vpack.c.b16 %v700, %v696
    %v1185 = vpack.c.b16 %v701, %v697
    %v1186 = vpack.c.b16 %v702, %v698
    %v1187 = vpack.c.b16 %v703, %v699
    %v1188 = vpack.c.b16 %v708, %v704
    %v1189 = vpack.c.b16 %v709, %v705
    %v1190 = vpack.c.b16 %v710, %v706
    %v1191 = vpack.c.b16 %v711, %v707
    %v1192 = vpack.c.b16 %v716, %v712
    %v1193 = vpack.c.b16 %v717, %v713
    %v1194 = vpack.c.b16 %v718, %v714
    %v1195 = vpack.c.b16 %v719, %v715
    %v1196 = vpack.c.b16 %v724, %v720
    %v1197 = vpack.c.b16 %v725, %v721
    %v1198 = vpack.c.b16 %v726, %v722
    %v1199 = vpack.c.b16 %v727, %v723
    %v1200 = vpack.c.b16 %v732, %v728
    %v1201 = vpack.c.b16 %v733, %v729
    %v1202 = vpack.c.b16 %v734, %v730
    %v1203 = vpack.c.b16 %v735, %v731
    %v1204 = vpack.c.b16 %v740, %v736
    %v1205 = vpack.c.b16 %v741, %v737
    %v1206 = vpack.c.b16 %v742, %v738
    %v1207 = vpack.c.b16 %v743, %v739
    %v1208 = vpack.c.b16 %v748, %v744
    %v1209 = vpack.c.b16 %v749, %v745
    %v1210 = vpack.c.b16 %v750, %v746
    %v1211 = vpack.c.b16 %v751, %v747
    %v1212 = vpack.c.b16 %v756, %v752
    %v1213 = vpack.c.b16 %v757, %v753
    %v1214 = vpack.c.b16 %v758, %v754
    %v1215 = vpack.c.b16 %v759, %v755
    %v1216 = vpack.c.b16 %v764, %v760
    %v1217 = vpack.c.b16 %v765, %v761
    %v1218 = vpack.c.b16 %v766, %v762
    %v1219 = vpack.c.b16 %v767, %v763
    %v1220 = vpack.c.b16 %v772, %v768
    %v1221 = vpack.c.b16 %v773, %v769
    %v1222 = vpack.c.b16 %v774, %v770
    %v1223 = vpack.c.b16 %v775, %v771
    %v1224 = vpack.c.b16 %v780, %v776
    %v1225 = vpack.c.b16 %v781, %v777
    %v1226 = vpack.c.b16 %v782, %v778
    %v1227 = vpack.c.b16 %v783, %v779
    %v1228 = vpack.c.b16 %v788, %v784
    %v1229 = vpack.c.b16 %v789, %v785
    %v1230 = vpack.c.b16 %v790, %v786
    %v1231 = vpack.c.b16 %v791, %v787
    %v1232 = vpack.c.b16 %v796, %v792
    %v1233 = vpack.c.b16 %v797, %v793
    %v1234 = vpack.c.b16 %v798, %v794
    %v1235 = vpack.c.b16 %v799, %v795
    %v1236 = vpack.c.b16 %v804, %v800
    %v1237 = vpack.c.b16 %v805, %v801
    %v1238 = vpack.c.b16 %v806, %v802
    %v1239 = vpack.c.b16 %v807, %v803
    %v1240 = vpack.c.b16 %v812, %v808
    %v1241 = vpack.c.b16 %v813, %v809
    %v1242 = vpack.c.b16 %v814, %v810
    %v1243 = vpack.c.b16 %v815, %v811
    %v1244 = vpack.c.b16 %v820, %v816
    %v1245 = vpack.c.b16 %v821, %v817
    %v1246 = vpack.c.b16 %v822, %v818
    %v1247 = vpack.c.b16 %v823, %v819
    %v1248 = vpack.c.b16 %v828, %v824
    %v1249 = vpack.c.b16 %v829, %v825
    %v1250 = vpack.c.b16 %v830, %v826
    %v1251 = vpack.c.b16 %v831, %v827
    %v1252 = vpack.c.b16 %v836, %v832
    %v1253 = vpack.c.b16 %v837, %v833
    %v1254 = vpack.c.b16 %v838, %v834
    %v1255 = vpack.c.b16 %v839, %v835
    %v1256 = vpack.c.b16 %v844, %v840
    %v1257 = vpack.c.b16 %v845, %v841
    %v1258 = vpack.c.b16 %v846, %v842
    %v1259 = vpack.c.b16 %v847, %v843
    %v1260 = vpack.c.b16 %v852, %v848
    %v1261 = vpack.c.b16 %v853, %v849
    %v1262 = vpack.c.b16 %v854, %v850
    %v1263 = vpack.c.b16 %v855, %v851
    %v1264 = vpack.c.b16 %v860, %v856
    %v1265 = vpack.c.b16 %v861, %v857
    %v1266 = vpack.c.b16 %v862, %v858
    %v1267 = vpack.c.b16 %v863, %v859
    %v1268 = vpack.c.b16 %v868, %v864
    %v1269 = vpack.c.b16 %v869, %v865
    %v1270 = vpack.c.b16 %v870, %v866
    %v1271 = vpack.c.b16 %v871, %v867
    %v1272 = vpack.c.b16 %v876, %v872
    %v1273 = vpack.c.b16 %v877, %v873
    %v1274 = vpack.c.b16 %v878, %v874
    %v1275 = vpack.c.b16 %v879, %v875
    %v1276 = vpack.c.b16 %v884, %v880
    %v1277 = vpack.c.b16 %v885, %v881
    %v1278 = vpack.c.b16 %v886, %v882
    %v1279 = vpack.c.b16 %v887, %v883
    %v1280 = vpack.c.b16 %v892, %v888
    %v1281 = vpack.c.b16 %v893, %v889
    %v1282 = vpack.c.b16 %v894, %v890
    %v1283 = vpack.c.b16 %v895, %v891
    %v1284 = vpack.c.b16 %v900, %v896
    %v1285 = vpack.c.b16 %v901, %v897
    %v1286 = vpack.c.b16 %v902, %v898
    %v1287 = vpack.c.b16 %v903, %v899
    %v1288 = vpack.c.b16 %v908, %v904
    %v1289 = vpack.c.b16 %v909, %v905
    %v1290 = vpack.c.b16 %v910, %v906
    %v1291 = vpack.c.b16 %v911, %v907
    %v1292 = vpack.c.b16 %v916, %v912
    %v1293 = vpack.c.b16 %v917, %v913
    %v1294 = vpack.c.b16 %v918, %v914
    %v1295 = vpack.c.b16 %v919, %v915
    %v1296 = vpack.c.b16 %v924, %v920
    %v1297 = vpack.c.b16 %v925, %v921
    %v1298 = vpack.c.b16 %v926, %v922
    %v1299 = vpack.c.b16 %v927, %v923
    %v1300 = vpack.c.b16 %v932, %v928
    %v1301 = vpack.c.b16 %v933, %v929
    %v1302 = vpack.c.b16 %v934, %v930
    %v1303 = vpack.c.b16 %v935, %v931
    %v1304 = vpack.c.b16 %v940, %v936
    %v1305 = vpack.c.b16 %v941, %v937
    %v1306 = vpack.c.b16 %v942, %v938
    %v1307 = vpack.c.b16 %v943, %v939
    %v1308 = vpack.c.b16 %v948, %v944
    %v1309 = vpack.c.b16 %v949, %v945
    %v1310 = vpack.c.b16 %v950, %v946
    %v1311 = vpack.c.b16 %v951, %v947
    %v1312 = vpack.c.b16 %v956, %v952
    %v1313 = vpack.c.b16 %v957, %v953
    %v1314 = vpack.c.b16 %v958, %v954
    %v1315 = vpack.c.b16 %v959, %v955
    %v1316 = vpack.c.b16 %v964, %v960
    %v1317 = vpack.c.b16 %v965, %v961
    %v1318 = vpack.c.b16 %v966, %v962
    %v1319 = vpack.c.b16 %v967, %v963
    %v1320 = vpack.c.b16 %v972, %v968
    %v1321 = vpack.c.b16 %v973, %v969
    %v1322 = vpack.c.b16 %v974, %v970
    %v1323 = vpack.c.b16 %v975, %v971
    %v1324 = vpack.c.b16 %v980, %v976
    %v1325 = vpack.c.b16 %v981, %v977
    %v1326 = vpack.c.b16 %v982, %v978
    %v1327 = vpack.c.b16 %v983, %v979
    %v1328 = vpack.c.b16 %v988, %v984
    %v1329 = vpack.c.b16 %v989, %v985
    %v1330 = vpack.c.b16 %v990, %v986
    %v1331 = vpack.c.b16 %v991, %v987
    %v1332 = vpack.c.b16 %v996, %v992
    %v1333 = vpack.c.b16 %v997, %v993
    %v1334 = vpack.c.b16 %v998, %v994
    %v1335 = vpack.c.b16 %v999, %v995
    %v1336 = vpack.c.b16 %v1004, %v1000
    %v1337 = vpack.c.b16 %v1005, %v1001
    %v1338 = vpack.c.b16 %v1006, %v1002
    %v1339 = vpack.c.b16 %v1007, %v1003
    %v1340 = vpack.c.b16 %v1012, %v1008
    %v1341 = vpack.c.b16 %v1013, %v1009
    %v1342 = vpack.c.b16 %v1014, %v1010
    %v1343 = vpack.c.b16 %v1015, %v1011
    %v1344 = vpack.c.b16 %v1020, %v1016
    %v1345 = vpack.c.b16 %v1021, %v1017
    %v1346 = vpack.c.b16 %v1022, %v1018
    %v1347 = vpack.c.b16 %v1023, %v1019
    %v1348 = vpack.c.b16 %v1028, %v1024
    %v1349 = vpack.c.b16 %v1029, %v1025
    %v1350 = vpack.c.b16 %v1030, %v1026
    %v1351 = vpack.c.b16 %v1031, %v1027
    %v1352 = vpack.c.b16 %v1036, %v1032
    %v1353 = vpack.c.b16 %v1037, %v1033
    %v1354 = vpack.c.b16 %v1038, %v1034
    %v1355 = vpack.c.b16 %v1039, %v1035
    %v1356 = vpack.c.b16 %v1044, %v1040
    %v1357 = vpack.c.b16 %v1045, %v1041
    %v1358 = vpack.c.b16 %v1046, %v1042
    %v1359 = vpack.c.b16 %v1047, %v1043
    %v1360 = vpack.c.b16 %v1052, %v1048
    %v1361 = vpack.c.b16 %v1053, %v1049
    %v1362 = vpack.c.b16 %v1054, %v1050
    %v1363 = vpack.c.b16 %v1055, %v1051
    %v1364 = vpack.c.b16 %v1060, %v1056
    %v1365 = vpack.c.b16 %v1061, %v1057
    %v1366 = vpack.c.b16 %v1062, %v1058
    %v1367 = vpack.c.b16 %v1063, %v1059
    %v1368 = vpack.c.b16 %v1068, %v1064
    %v1369 = vpack.c.b16 %v1069, %v1065
    %v1370 = vpack.c.b16 %v1070, %v1066
    %v1371 = vpack.c.b16 %v1071, %v1067
    %v1372 = vpack.c.b16 %v1076, %v1072
    %v1373 = vpack.c.b16 %v1077, %v1073
    %v1374 = vpack.c.b16 %v1078, %v1074
    %v1375 = vpack.c.b16 %v1079, %v1075
    %v1376 = vpack.c.b16 %v1084, %v1080
    %v1377 = vpack.c.b16 %v1085, %v1081
    %v1378 = vpack.c.b16 %v1086, %v1082
    %v1379 = vpack.c.b16 %v1087, %v1083
    %v1380 = vpack.c.b16 %v1092, %v1088
    %v1381 = vpack.c.b16 %v1093, %v1089
    %v1382 = vpack.c.b16 %v1094, %v1090
    %v1383 = vpack.c.b16 %v1095, %v1091
    %v1384 = vpack.c.b16 %v1100, %v1096
    %v1385 = vpack.c.b16 %v1101, %v1097
    %v1386 = vpack.c.b16 %v1102, %v1098
    %v1387 = vpack.c.b16 %v1103, %v1099
    %v1388 = vpack.c.b16 %v1108, %v1104
    %v1389 = vpack.c.b16 %v1109, %v1105
    %v1390 = vpack.c.b16 %v1110, %v1106
    %v1391 = vpack.c.b16 %v1111, %v1107
    %v1392 = vpack.c.b16 %v1116, %v1112
    %v1393 = vpack.c.b16 %v1117, %v1113
    %v1394 = vpack.c.b16 %v1118, %v1114
    %v1395 = vpack.c.b16 %v1119, %v1115
    %v1396 = vpack.c.b16 %v1124, %v1120
    %v1397 = vpack.c.b16 %v1125, %v1121
    %v1398 = vpack.c.b16 %v1126, %v1122
    %v1399 = vpack.c.b16 %v1127, %v1123
    %v1400 = vpack.c.b16 %v1132, %v1128
    %v1401 = vpack.c.b16 %v1133, %v1129
    %v1402 = vpack.c.b16 %v1134, %v1130
    %v1403 = vpack.c.b16 %v1135, %v1131
    %v1404 = vpack.c.b16 %v1140, %v1136
    %v1405 = vpack.c.b16 %v1141, %v1137
    %v1406 = vpack.c.b16 %v1142, %v1138
    %v1407 = vpack.c.b16 %v1143, %v1139
    %v1408 = vpack.c.b16 %v1148, %v1144
    %v1409 = vpack.c.b16 %v1149, %v1145
    %v1410 = vpack.c.b16 %v1150, %v1146
    %v1411 = vpack.c.b16 %v1151, %v1147
    %v1412 = vpack.c.b16 %v1156, %v1152
    %v1413 = vpack.c.b16 %v1157, %v1153
    %v1414 = vpack.c.b16 %v1158, %v1154
    %v1415 = vpack.c.b16 %v1159, %v1155
    %1672 = vmatprep.subr.bf16.mxu0 %v1189
    %1673 = vmatpush1.bf16.msra.mxu0 %v1188
    %1674 = vmatprep.subr.bf16.mxu0 %v1185
    %1675 = vmatpush1.bf16.msra.mxu0 %v1184
    %1676 = vmatprep.subr.bf16.mxu0 %v1181
    %1677 = vmatpush1.bf16.msra.mxu0 %v1180
    %1678 = vmatprep.subr.bf16.mxu0 %v1177
    %1679 = vmatpush1.bf16.msra.mxu0 %v1176
    %1680 = vmatprep.subr.bf16.mxu0 %v1173
    %1681 = vmatpush1.bf16.msra.mxu0 %v1172
    %1682 = vmatprep.subr.bf16.mxu0 %v1169
    %1683 = vmatpush1.bf16.msra.mxu0 %v1168
    %1684 = vmatprep.subr.bf16.mxu0 %v1165
    %1685 = vmatpush1.bf16.msra.mxu0 %v1164
    %1686 = vmatprep.subr.bf16.mxu0 %v1161
    %1687 = vmatpush1.bf16.msra.mxu0 %v1160
    %1688 = vmatprep.subr.bf16.mxu0 %v1221
    %1689 = vmatpush2.bf16.msra.mxu0 %v1220
    %1690 = vmatprep.subr.bf16.mxu0 %v1217
    %1691 = vmatpush2.bf16.msra.mxu0 %v1216
    %1692 = vmatprep.subr.bf16.mxu0 %v1213
    %1693 = vmatpush2.bf16.msra.mxu0 %v1212
    %1694 = vmatprep.subr.bf16.mxu0 %v1209
    %1695 = vmatpush2.bf16.msra.mxu0 %v1208
    %1696 = vmatprep.subr.bf16.mxu0 %v1205
    %1697 = vmatpush2.bf16.msra.mxu0 %v1204
    %1698 = vmatprep.subr.bf16.mxu0 %v1201
    %1699 = vmatpush2.bf16.msra.mxu0 %v1200
    %1700 = vmatprep.subr.bf16.mxu0 %v1197
    %1701 = vmatpush2.bf16.msra.mxu0 %v1196
    %1702 = vmatprep.subr.bf16.mxu0 %v1193
    %1703 = vmatpush2.bf16.msra.mxu0 %v1192
    %1704 = vmatprep.mubr.bf16.mxu0 %v107
    %1705 = vmatmul.mubr.bf16.gmra.mxu0 %v106
    %v1706 = vpop.f32.mrf.mxu0
    %v1707 = vadd.f32 %v375, %v1706
    %v1708 = vpop.f32.mrf.mxu0
    %v1709 = vadd.f32 %v379, %v1708
    %v1710 = vpop.f32.mrf.mxu0
    %v1711 = vpop.f32.mrf.mxu0
    %1712 = vdwg.mxu0
    %1713 = vmatprep.subr.bf16.mxu0 %v1253
    %1714 = vmatpush1.bf16.msra.mxu0 %v1252
    %1715 = vmatprep.subr.bf16.mxu0 %v1249
    %1716 = vmatpush1.bf16.msra.mxu0 %v1248
    %1717 = vmatprep.subr.bf16.mxu0 %v1245
    %1718 = vmatpush1.bf16.msra.mxu0 %v1244
    %1719 = vmatprep.subr.bf16.mxu0 %v1241
    %1720 = vmatpush1.bf16.msra.mxu0 %v1240
    %1721 = vmatprep.subr.bf16.mxu0 %v1237
    %1722 = vmatpush1.bf16.msra.mxu0 %v1236
    %1723 = vmatprep.subr.bf16.mxu0 %v1233
    %1724 = vmatpush1.bf16.msra.mxu0 %v1232
    %1725 = vmatprep.subr.bf16.mxu0 %v1229
    %1726 = vmatpush1.bf16.msra.mxu0 %v1228
    %1727 = vmatprep.subr.bf16.mxu0 %v1225
    %1728 = vmatpush1.bf16.msra.mxu0 %v1224
    %1729 = vmatprep.subr.bf16.mxu0 %v1285
    %1730 = vmatpush2.bf16.msra.mxu0 %v1284
    %1731 = vmatprep.subr.bf16.mxu0 %v1281
    %1732 = vmatpush2.bf16.msra.mxu0 %v1280
    %1733 = vmatprep.subr.bf16.mxu0 %v1277
    %1734 = vmatpush2.bf16.msra.mxu0 %v1276
    %1735 = vmatprep.subr.bf16.mxu0 %v1273
    %1736 = vmatpush2.bf16.msra.mxu0 %v1272
    %1737 = vmatprep.subr.bf16.mxu0 %v1269
    %1738 = vmatpush2.bf16.msra.mxu0 %v1268
    %1739 = vmatprep.subr.bf16.mxu0 %v1265
    %1740 = vmatpush2.bf16.msra.mxu0 %v1264
    %1741 = vmatprep.subr.bf16.mxu0 %v1261
    %1742 = vmatpush2.bf16.msra.mxu0 %v1260
    %1743 = vmatprep.subr.bf16.mxu0 %v1257
    %1744 = vmatpush2.bf16.msra.mxu0 %v1256
    %1745 = vmatprep.mubr.bf16.mxu0 %v109
    %1746 = vmatmul.mubr.bf16.gmra.mxu0 %v108
    %v1747 = vpop.f32.mrf.mxu0
    %v1748 = vadd.f32 %v1707, %v1747
    %v1749 = vpop.f32.mrf.mxu0
    %v1750 = vadd.f32 %v1709, %v1749
    %v1751 = vpop.f32.mrf.mxu0
    %v1752 = vpop.f32.mrf.mxu0
    %1753 = vdwg.mxu0
    %1754 = vmatprep.subr.bf16.mxu0 %v1317
    %1755 = vmatpush1.bf16.msra.mxu0 %v1316
    %1756 = vmatprep.subr.bf16.mxu0 %v1313
    %1757 = vmatpush1.bf16.msra.mxu0 %v1312
    %1758 = vmatprep.subr.bf16.mxu0 %v1309
    %1759 = vmatpush1.bf16.msra.mxu0 %v1308
    %1760 = vmatprep.subr.bf16.mxu0 %v1305
    %1761 = vmatpush1.bf16.msra.mxu0 %v1304
    %1762 = vmatprep.subr.bf16.mxu0 %v1301
    %1763 = vmatpush1.bf16.msra.mxu0 %v1300
    %1764 = vmatprep.subr.bf16.mxu0 %v1297
    %1765 = vmatpush1.bf16.msra.mxu0 %v1296
    %1766 = vmatprep.subr.bf16.mxu0 %v1293
    %1767 = vmatpush1.bf16.msra.mxu0 %v1292
    %1768 = vmatprep.subr.bf16.mxu0 %v1289
    %1769 = vmatpush1.bf16.msra.mxu0 %v1288
    %1770 = vmatprep.subr.bf16.mxu0 %v1349
    %1771 = vmatpush2.bf16.msra.mxu0 %v1348
    %1772 = vmatprep.subr.bf16.mxu0 %v1345
    %1773 = vmatpush2.bf16.msra.mxu0 %v1344
    %1774 = vmatprep.subr.bf16.mxu0 %v1341
    %1775 = vmatpush2.bf16.msra.mxu0 %v1340
    %1776 = vmatprep.subr.bf16.mxu0 %v1337
    %1777 = vmatpush2.bf16.msra.mxu0 %v1336
    %1778 = vmatprep.subr.bf16.mxu0 %v1333
    %1779 = vmatpush2.bf16.msra.mxu0 %v1332
    %1780 = vmatprep.subr.bf16.mxu0 %v1329
    %1781 = vmatpush2.bf16.msra.mxu0 %v1328
    %1782 = vmatprep.subr.bf16.mxu0 %v1325
    %1783 = vmatpush2.bf16.msra.mxu0 %v1324
    %1784 = vmatprep.subr.bf16.mxu0 %v1321
    %1785 = vmatpush2.bf16.msra.mxu0 %v1320
    %1786 = vmatprep.mubr.bf16.mxu0 %v111
    %1787 = vmatmul.mubr.bf16.gmra.mxu0 %v110
    %v1788 = vpop.f32.mrf.mxu0
    %v1789 = vadd.f32 %v1748, %v1788
    %v1790 = vpop.f32.mrf.mxu0
    %v1791 = vadd.f32 %v1750, %v1790
    %v1792 = vpop.f32.mrf.mxu0
    %v1793 = vpop.f32.mrf.mxu0
    %1794 = vdwg.mxu0
    %1795 = vmatprep.subr.bf16.mxu0 %v1381
    %1796 = vmatpush1.bf16.msra.mxu0 %v1380
    %1797 = vmatprep.subr.bf16.mxu0 %v1377
    %1798 = vmatpush1.bf16.msra.mxu0 %v1376
    %1799 = vmatprep.subr.bf16.mxu0 %v1373
    %1800 = vmatpush1.bf16.msra.mxu0 %v1372
    %1801 = vmatprep.subr.bf16.mxu0 %v1369
    %1802 = vmatpush1.bf16.msra.mxu0 %v1368
    %1803 = vmatprep.subr.bf16.mxu0 %v1365
    %1804 = vmatpush1.bf16.msra.mxu0 %v1364
    %1805 = vmatprep.subr.bf16.mxu0 %v1361
    %1806 = vmatpush1.bf16.msra.mxu0 %v1360
    %1807 = vmatprep.subr.bf16.mxu0 %v1357
    %1808 = vmatpush1.bf16.msra.mxu0 %v1356
    %1809 = vmatprep.subr.bf16.mxu0 %v1353
    %1810 = vmatpush1.bf16.msra.mxu0 %v1352
    %1811 = vmatprep.subr.bf16.mxu0 %v1413
    %1812 = vmatpush2.bf16.msra.mxu0 %v1412
    %1813 = vmatprep.subr.bf16.mxu0 %v1409
    %1814 = vmatpush2.bf16.msra.mxu0 %v1408
    %1815 = vmatprep.subr.bf16.mxu0 %v1405
    %1816 = vmatpush2.bf16.msra.mxu0 %v1404
    %1817 = vmatprep.subr.bf16.mxu0 %v1401
    %1818 = vmatpush2.bf16.msra.mxu0 %v1400
    %1819 = vmatprep.subr.bf16.mxu0 %v1397
    %1820 = vmatpush2.bf16.msra.mxu0 %v1396
    %1821 = vmatprep.subr.bf16.mxu0 %v1393
    %1822 = vmatpush2.bf16.msra.mxu0 %v1392
    %1823 = vmatprep.subr.bf16.mxu0 %v1389
    %1824 = vmatpush2.bf16.msra.mxu0 %v1388
    %1825 = vmatprep.subr.bf16.mxu0 %v1385
    %1826 = vmatpush2.bf16.msra.mxu0 %v1384
    %1827 = vmatprep.mubr.bf16.mxu0 %v113
    %1828 = vmatmul.mubr.bf16.gmra.mxu0 %v112
    %v1829 = vpop.f32.mrf.mxu0
    %v1830 = vadd.f32 %v1789, %v1829
    %v1831 = vpop.f32.mrf.mxu0
    %v1832 = vadd.f32 %v1791, %v1831
    %v1833 = vpop.f32.mrf.mxu0
    %v1834 = vpop.f32.mrf.mxu0
    %1835 = vdwg.mxu0
    %1836 = vmatprep.subr.bf16.mxu0 %v1191
    %1837 = vmatpush1.bf16.msra.mxu0 %v1190
    %1838 = vmatprep.subr.bf16.mxu0 %v1187
    %1839 = vmatpush1.bf16.msra.mxu0 %v1186
    %1840 = vmatprep.subr.bf16.mxu0 %v1183
    %1841 = vmatpush1.bf16.msra.mxu0 %v1182
    %1842 = vmatprep.subr.bf16.mxu0 %v1179
    %1843 = vmatpush1.bf16.msra.mxu0 %v1178
    %1844 = vmatprep.subr.bf16.mxu0 %v1175
    %1845 = vmatpush1.bf16.msra.mxu0 %v1174
    %1846 = vmatprep.subr.bf16.mxu0 %v1171
    %1847 = vmatpush1.bf16.msra.mxu0 %v1170
    %1848 = vmatprep.subr.bf16.mxu0 %v1167
    %1849 = vmatpush1.bf16.msra.mxu0 %v1166
    %1850 = vmatprep.subr.bf16.mxu0 %v1163
    %1851 = vmatpush1.bf16.msra.mxu0 %v1162
    %1852 = vmatprep.subr.bf16.mxu0 %v1223
    %1853 = vmatpush2.bf16.msra.mxu0 %v1222
    %1854 = vmatprep.subr.bf16.mxu0 %v1219
    %1855 = vmatpush2.bf16.msra.mxu0 %v1218
    %1856 = vmatprep.subr.bf16.mxu0 %v1215
    %1857 = vmatpush2.bf16.msra.mxu0 %v1214
    %1858 = vmatprep.subr.bf16.mxu0 %v1211
    %1859 = vmatpush2.bf16.msra.mxu0 %v1210
    %1860 = vmatprep.subr.bf16.mxu0 %v1207
    %1861 = vmatpush2.bf16.msra.mxu0 %v1206
    %1862 = vmatprep.subr.bf16.mxu0 %v1203
    %1863 = vmatpush2.bf16.msra.mxu0 %v1202
    %1864 = vmatprep.subr.bf16.mxu0 %v1199
    %1865 = vmatpush2.bf16.msra.mxu0 %v1198
    %1866 = vmatprep.subr.bf16.mxu0 %v1195
    %1867 = vmatpush2.bf16.msra.mxu0 %v1194
    %1868 = vmatprep.mubr.bf16.mxu0 %v107
    %1869 = vmatmul.mubr.bf16.gmra.mxu0 %v106
    %v1870 = vpop.f32.mrf.mxu0
    %v1871 = vadd.f32 %v383, %v1870
    %v1872 = vpop.f32.mrf.mxu0
    %v1873 = vadd.f32 %v387, %v1872
    %v1874 = vpop.f32.mrf.mxu0
    %v1875 = vpop.f32.mrf.mxu0
    %1876 = vdwg.mxu0
    %1877 = vmatprep.subr.bf16.mxu0 %v1255
    %1878 = vmatpush1.bf16.msra.mxu0 %v1254
    %1879 = vmatprep.subr.bf16.mxu0 %v1251
    %1880 = vmatpush1.bf16.msra.mxu0 %v1250
    %1881 = vmatprep.subr.bf16.mxu0 %v1247
    %1882 = vmatpush1.bf16.msra.mxu0 %v1246
    %1883 = vmatprep.subr.bf16.mxu0 %v1243
    %1884 = vmatpush1.bf16.msra.mxu0 %v1242
    %1885 = vmatprep.subr.bf16.mxu0 %v1239
    %1886 = vmatpush1.bf16.msra.mxu0 %v1238
    %1887 = vmatprep.subr.bf16.mxu0 %v1235
    %1888 = vmatpush1.bf16.msra.mxu0 %v1234
    %1889 = vmatprep.subr.bf16.mxu0 %v1231
    %1890 = vmatpush1.bf16.msra.mxu0 %v1230
    %1891 = vmatprep.subr.bf16.mxu0 %v1227
    %1892 = vmatpush1.bf16.msra.mxu0 %v1226
    %1893 = vmatprep.subr.bf16.mxu0 %v1287
    %1894 = vmatpush2.bf16.msra.mxu0 %v1286
    %1895 = vmatprep.subr.bf16.mxu0 %v1283
    %1896 = vmatpush2.bf16.msra.mxu0 %v1282
    %1897 = vmatprep.subr.bf16.mxu0 %v1279
    %1898 = vmatpush2.bf16.msra.mxu0 %v1278
    %1899 = vmatprep.subr.bf16.mxu0 %v1275
    %1900 = vmatpush2.bf16.msra.mxu0 %v1274
    %1901 = vmatprep.subr.bf16.mxu0 %v1271
    %1902 = vmatpush2.bf16.msra.mxu0 %v1270
    %1903 = vmatprep.subr.bf16.mxu0 %v1267
    %1904 = vmatpush2.bf16.msra.mxu0 %v1266
    %1905 = vmatprep.subr.bf16.mxu0 %v1263
    %1906 = vmatpush2.bf16.msra.mxu0 %v1262
    %1907 = vmatprep.subr.bf16.mxu0 %v1259
    %1908 = vmatpush2.bf16.msra.mxu0 %v1258
    %1909 = vmatprep.mubr.bf16.mxu0 %v109
    %1910 = vmatmul.mubr.bf16.gmra.mxu0 %v108
    %v1911 = vpop.f32.mrf.mxu0
    %v1912 = vadd.f32 %v1871, %v1911
    %v1913 = vpop.f32.mrf.mxu0
    %v1914 = vadd.f32 %v1873, %v1913
    %v1915 = vpop.f32.mrf.mxu0
    %v1916 = vpop.f32.mrf.mxu0
    %1917 = vdwg.mxu0
    %1918 = vmatprep.subr.bf16.mxu0 %v1319
    %1919 = vmatpush1.bf16.msra.mxu0 %v1318
    %1920 = vmatprep.subr.bf16.mxu0 %v1315
    %1921 = vmatpush1.bf16.msra.mxu0 %v1314
    %1922 = vmatprep.subr.bf16.mxu0 %v1311
    %1923 = vmatpush1.bf16.msra.mxu0 %v1310
    %1924 = vmatprep.subr.bf16.mxu0 %v1307
    %1925 = vmatpush1.bf16.msra.mxu0 %v1306
    %1926 = vmatprep.subr.bf16.mxu0 %v1303
    %1927 = vmatpush1.bf16.msra.mxu0 %v1302
    %1928 = vmatprep.subr.bf16.mxu0 %v1299
    %1929 = vmatpush1.bf16.msra.mxu0 %v1298
    %1930 = vmatprep.subr.bf16.mxu0 %v1295
    %1931 = vmatpush1.bf16.msra.mxu0 %v1294
    %1932 = vmatprep.subr.bf16.mxu0 %v1291
    %1933 = vmatpush1.bf16.msra.mxu0 %v1290
    %1934 = vmatprep.subr.bf16.mxu0 %v1351
    %1935 = vmatpush2.bf16.msra.mxu0 %v1350
    %1936 = vmatprep.subr.bf16.mxu0 %v1347
    %1937 = vmatpush2.bf16.msra.mxu0 %v1346
    %1938 = vmatprep.subr.bf16.mxu0 %v1343
    %1939 = vmatpush2.bf16.msra.mxu0 %v1342
    %1940 = vmatprep.subr.bf16.mxu0 %v1339
    %1941 = vmatpush2.bf16.msra.mxu0 %v1338
    %1942 = vmatprep.subr.bf16.mxu0 %v1335
    %1943 = vmatpush2.bf16.msra.mxu0 %v1334
    %1944 = vmatprep.subr.bf16.mxu0 %v1331
    %1945 = vmatpush2.bf16.msra.mxu0 %v1330
    %1946 = vmatprep.subr.bf16.mxu0 %v1327
    %1947 = vmatpush2.bf16.msra.mxu0 %v1326
    %1948 = vmatprep.subr.bf16.mxu0 %v1323
    %1949 = vmatpush2.bf16.msra.mxu0 %v1322
    %1950 = vmatprep.mubr.bf16.mxu0 %v111
    %1951 = vmatmul.mubr.bf16.gmra.mxu0 %v110
    %v1952 = vpop.f32.mrf.mxu0
    %v1953 = vadd.f32 %v1912, %v1952
    %v1954 = vpop.f32.mrf.mxu0
    %v1955 = vadd.f32 %v1914, %v1954
    %v1956 = vpop.f32.mrf.mxu0
    %v1957 = vpop.f32.mrf.mxu0
    %1958 = vdwg.mxu0
    %1959 = vmatprep.subr.bf16.mxu0 %v1383
    %1960 = vmatpush1.bf16.msra.mxu0 %v1382
    %1961 = vmatprep.subr.bf16.mxu0 %v1379
    %1962 = vmatpush1.bf16.msra.mxu0 %v1378
    %1963 = vmatprep.subr.bf16.mxu0 %v1375
    %1964 = vmatpush1.bf16.msra.mxu0 %v1374
    %1965 = vmatprep.subr.bf16.mxu0 %v1371
    %1966 = vmatpush1.bf16.msra.mxu0 %v1370
    %1967 = vmatprep.subr.bf16.mxu0 %v1367
    %1968 = vmatpush1.bf16.msra.mxu0 %v1366
    %1969 = vmatprep.subr.bf16.mxu0 %v1363
    %1970 = vmatpush1.bf16.msra.mxu0 %v1362
    %1971 = vmatprep.subr.bf16.mxu0 %v1359
    %1972 = vmatpush1.bf16.msra.mxu0 %v1358
    %1973 = vmatprep.subr.bf16.mxu0 %v1355
    %1974 = vmatpush1.bf16.msra.mxu0 %v1354
    %1975 = vmatprep.subr.bf16.mxu0 %v1415
    %1976 = vmatpush2.bf16.msra.mxu0 %v1414
    %1977 = vmatprep.subr.bf16.mxu0 %v1411
    %1978 = vmatpush2.bf16.msra.mxu0 %v1410
    %1979 = vmatprep.subr.bf16.mxu0 %v1407
    %1980 = vmatpush2.bf16.msra.mxu0 %v1406
    %1981 = vmatprep.subr.bf16.mxu0 %v1403
    %1982 = vmatpush2.bf16.msra.mxu0 %v1402
    %1983 = vmatprep.subr.bf16.mxu0 %v1399
    %1984 = vmatpush2.bf16.msra.mxu0 %v1398
    %1985 = vmatprep.subr.bf16.mxu0 %v1395
    %1986 = vmatpush2.bf16.msra.mxu0 %v1394
    %1987 = vmatprep.subr.bf16.mxu0 %v1391
    %1988 = vmatpush2.bf16.msra.mxu0 %v1390
    %1989 = vmatprep.subr.bf16.mxu0 %v1387
    %1990 = vmatpush2.bf16.msra.mxu0 %v1386
    %1991 = vmatprep.mubr.bf16.mxu0 %v113
    %1992 = vmatmul.mubr.bf16.gmra.mxu0 %v112
    %v1993 = vpop.f32.mrf.mxu0
    %v1994 = vadd.f32 %v1953, %v1993
    %v1995 = vpop.f32.mrf.mxu0
    %v1996 = vadd.f32 %v1955, %v1995
    %v1997 = vpop.f32.mrf.mxu0
    %v1998 = vpop.f32.mrf.mxu0
    %1999 = vdwg.mxu0
    %vm2000 = vcmp.gt.f32.partialorder %v1830, 0.0
    %vm2001 = vcmp.gt.f32.partialorder %v1832, 0.0
    %vm2002 = vcmp.gt.f32.partialorder %v1994, 0.0
    %vm2003 = vcmp.gt.f32.partialorder %v1996, 0.0
    %v2004 = vmul.f32 %v1830, 0.2
    %v2005 = vmul.f32 %v1832, 0.2
    %v2006 = vmul.f32 %v1994, 0.2
    %v2007 = vmul.f32 %v1996, 0.2
    %v2008 = vsel %vm2000, %v1830, %v2004
    %v2009 = vsel %vm2001, %v1832, %v2005
    %v2010 = vsel %vm2002, %v1994, %v2006
    %v2011 = vsel %vm2003, %v1996, %v2007
    %v2012 = vpack.c.bf16 %v2008, %v2008
    %v2013 = vpack.c.bf16 %v2009, %v2009
    %v2014 = vpack.c.bf16 %v2010, %v2010
    %v2015 = vpack.c.bf16 %v2011, %v2011
    %v2016 = vld [vmem:[#allocation8] sm:$0xff]
    %v2017 = vld [vmem:[#allocation8 + $0x8] sm:$0xff]
    %v2018 = vld [vmem:[#allocation8 + $0x10] sm:$0xff]
    %v2019 = vld [vmem:[#allocation8 + $0x18] sm:$0xff]
    %v2020 = vld [vmem:[#allocation8 + $0x20] sm:$0xff]
    %v2021 = vld [vmem:[#allocation8 + $0x28] sm:$0xff]
    %v2022 = vld [vmem:[#allocation8 + $0x30] sm:$0xff]
    %v2023 = vld [vmem:[#allocation8 + $0x38] sm:$0xff]
    %v2024 = vld [vmem:[#allocation8 + $0x40] sm:$0xff]
    %v2025 = vld [vmem:[#allocation8 + $0x48] sm:$0xff]
    %v2026 = vld [vmem:[#allocation8 + $0x50] sm:$0xff]
    %v2027 = vld [vmem:[#allocation8 + $0x58] sm:$0xff]
    %v2028 = vld [vmem:[#allocation8 + $0x60] sm:$0xff]
    %v2029 = vld [vmem:[#allocation8 + $0x68] sm:$0xff]
    %v2030 = vld [vmem:[#allocation8 + $0x70] sm:$0xff]
    %v2031 = vld [vmem:[#allocation8 + $0x78] sm:$0xff]
    %v2032 = vld [vmem:[#allocation8 + $0x80] sm:$0xff]
    %v2033 = vld [vmem:[#allocation8 + $0x88] sm:$0xff]
    %v2034 = vld [vmem:[#allocation8 + $0x90] sm:$0xff]
    %v2035 = vld [vmem:[#allocation8 + $0x98] sm:$0xff]
    %v2036 = vld [vmem:[#allocation8 + $0xa0] sm:$0xff]
    %v2037 = vld [vmem:[#allocation8 + $0xa8] sm:$0xff]
    %v2038 = vld [vmem:[#allocation8 + $0xb0] sm:$0xff]
    %v2039 = vld [vmem:[#allocation8 + $0xb8] sm:$0xff]
    %v2040 = vld [vmem:[#allocation8 + $0xc0] sm:$0xff]
    %v2041 = vld [vmem:[#allocation8 + $0xc8] sm:$0xff]
    %v2042 = vld [vmem:[#allocation8 + $0xd0] sm:$0xff]
    %v2043 = vld [vmem:[#allocation8 + $0xd8] sm:$0xff]
    %v2044 = vld [vmem:[#allocation8 + $0xe0] sm:$0xff]
    %v2045 = vld [vmem:[#allocation8 + $0xe8] sm:$0xff]
    %v2046 = vld [vmem:[#allocation8 + $0xf0] sm:$0xff]
    %v2047 = vld [vmem:[#allocation8 + $0xf8] sm:$0xff]
    %v2048 = vld [vmem:[#allocation8 + $0x100] sm:$0xff]
    %v2049 = vld [vmem:[#allocation8 + $0x108] sm:$0xff]
    %v2050 = vld [vmem:[#allocation8 + $0x110] sm:$0xff]
    %v2051 = vld [vmem:[#allocation8 + $0x118] sm:$0xff]
    %v2052 = vld [vmem:[#allocation8 + $0x120] sm:$0xff]
    %v2053 = vld [vmem:[#allocation8 + $0x128] sm:$0xff]
    %v2054 = vld [vmem:[#allocation8 + $0x130] sm:$0xff]
    %v2055 = vld [vmem:[#allocation8 + $0x138] sm:$0xff]
    %v2056 = vld [vmem:[#allocation8 + $0x140] sm:$0xff]
    %v2057 = vld [vmem:[#allocation8 + $0x148] sm:$0xff]
    %v2058 = vld [vmem:[#allocation8 + $0x150] sm:$0xff]
    %v2059 = vld [vmem:[#allocation8 + $0x158] sm:$0xff]
    %v2060 = vld [vmem:[#allocation8 + $0x160] sm:$0xff]
    %v2061 = vld [vmem:[#allocation8 + $0x168] sm:$0xff]
    %v2062 = vld [vmem:[#allocation8 + $0x170] sm:$0xff]
    %v2063 = vld [vmem:[#allocation8 + $0x178] sm:$0xff]
    %v2064 = vld [vmem:[#allocation8 + $0x180] sm:$0xff]
    %v2065 = vld [vmem:[#allocation8 + $0x188] sm:$0xff]
    %v2066 = vld [vmem:[#allocation8 + $0x190] sm:$0xff]
    %v2067 = vld [vmem:[#allocation8 + $0x198] sm:$0xff]
    %v2068 = vld [vmem:[#allocation8 + $0x1a0] sm:$0xff]
    %v2069 = vld [vmem:[#allocation8 + $0x1a8] sm:$0xff]
    %v2070 = vld [vmem:[#allocation8 + $0x1b0] sm:$0xff]
    %v2071 = vld [vmem:[#allocation8 + $0x1b8] sm:$0xff]
    %v2072 = vld [vmem:[#allocation8 + $0x1c0] sm:$0xff]
    %v2073 = vld [vmem:[#allocation8 + $0x1c8] sm:$0xff]
    %v2074 = vld [vmem:[#allocation8 + $0x1d0] sm:$0xff]
    %v2075 = vld [vmem:[#allocation8 + $0x1d8] sm:$0xff]
    %v2076 = vld [vmem:[#allocation8 + $0x1e0] sm:$0xff]
    %v2077 = vld [vmem:[#allocation8 + $0x1e8] sm:$0xff]
    %v2078 = vld [vmem:[#allocation8 + $0x1f0] sm:$0xff]
    %v2079 = vld [vmem:[#allocation8 + $0x1f8] sm:$0xff]
    %v2080 = vld [vmem:[%s4] sm:$0x3]
    %v2082 = vlaneseq
    %v2083 = vshrl.u32 %v2082, 7
    %v2084 = vsub.s32 0, %v2083
    %v2085 = vrot.slane %v2080, %v2084
    %v2086 = vlaneseq
    %v2087 = vshrl.u32 %v2086, 7
    %v2088 = vsub.s32 1, %v2087
    %v2089 = vrot.slane %v2080, %v2088
    %v2156 = vunpack.c.l.b16 %v2016
    %v2157 = vunpack.c.h.b16 %v2016
    %v2158 = vunpack.c.l.b16 %v2017
    %v2159 = vunpack.c.h.b16 %v2017
    %v2160 = vunpack.c.l.b16 %v2018
    %v2161 = vunpack.c.h.b16 %v2018
    %v2162 = vunpack.c.l.b16 %v2019
    %v2163 = vunpack.c.h.b16 %v2019
    %v2164 = vunpack.c.l.b16 %v2020
    %v2165 = vunpack.c.h.b16 %v2020
    %v2166 = vunpack.c.l.b16 %v2021
    %v2167 = vunpack.c.h.b16 %v2021
    %v2168 = vunpack.c.l.b16 %v2022
    %v2169 = vunpack.c.h.b16 %v2022
    %v2170 = vunpack.c.l.b16 %v2023
    %v2171 = vunpack.c.h.b16 %v2023
    %v2172 = vunpack.c.l.b16 %v2024
    %v2173 = vunpack.c.h.b16 %v2024
    %v2174 = vunpack.c.l.b16 %v2025
    %v2175 = vunpack.c.h.b16 %v2025
    %v2176 = vunpack.c.l.b16 %v2026
    %v2177 = vunpack.c.h.b16 %v2026
    %v2178 = vunpack.c.l.b16 %v2027
    %v2179 = vunpack.c.h.b16 %v2027
    %v2180 = vunpack.c.l.b16 %v2028
    %v2181 = vunpack.c.h.b16 %v2028
    %v2182 = vunpack.c.l.b16 %v2029
    %v2183 = vunpack.c.h.b16 %v2029
    %v2184 = vunpack.c.l.b16 %v2030
    %v2185 = vunpack.c.h.b16 %v2030
    %v2186 = vunpack.c.l.b16 %v2031
    %v2187 = vunpack.c.h.b16 %v2031
    %v2188 = vunpack.c.l.b16 %v2032
    %v2189 = vunpack.c.h.b16 %v2032
    %v2190 = vunpack.c.l.b16 %v2033
    %v2191 = vunpack.c.h.b16 %v2033
    %v2192 = vunpack.c.l.b16 %v2034
    %v2193 = vunpack.c.h.b16 %v2034
    %v2194 = vunpack.c.l.b16 %v2035
    %v2195 = vunpack.c.h.b16 %v2035
    %v2196 = vunpack.c.l.b16 %v2036
    %v2197 = vunpack.c.h.b16 %v2036
    %v2198 = vunpack.c.l.b16 %v2037
    %v2199 = vunpack.c.h.b16 %v2037
    %v2200 = vunpack.c.l.b16 %v2038
    %v2201 = vunpack.c.h.b16 %v2038
    %v2202 = vunpack.c.l.b16 %v2039
    %v2203 = vunpack.c.h.b16 %v2039
    %v2204 = vunpack.c.l.b16 %v2040
    %v2205 = vunpack.c.h.b16 %v2040
    %v2206 = vunpack.c.l.b16 %v2041
    %v2207 = vunpack.c.h.b16 %v2041
    %v2208 = vunpack.c.l.b16 %v2042
    %v2209 = vunpack.c.h.b16 %v2042
    %v2210 = vunpack.c.l.b16 %v2043
    %v2211 = vunpack.c.h.b16 %v2043
    %v2212 = vunpack.c.l.b16 %v2044
    %v2213 = vunpack.c.h.b16 %v2044
    %v2214 = vunpack.c.l.b16 %v2045
    %v2215 = vunpack.c.h.b16 %v2045
    %v2216 = vunpack.c.l.b16 %v2046
    %v2217 = vunpack.c.h.b16 %v2046
    %v2218 = vunpack.c.l.b16 %v2047
    %v2219 = vunpack.c.h.b16 %v2047
    %v2220 = vunpack.c.l.b16 %v2048
    %v2221 = vunpack.c.h.b16 %v2048
    %v2222 = vunpack.c.l.b16 %v2049
    %v2223 = vunpack.c.h.b16 %v2049
    %v2224 = vunpack.c.l.b16 %v2050
    %v2225 = vunpack.c.h.b16 %v2050
    %v2226 = vunpack.c.l.b16 %v2051
    %v2227 = vunpack.c.h.b16 %v2051
    %v2228 = vunpack.c.l.b16 %v2052
    %v2229 = vunpack.c.h.b16 %v2052
    %v2230 = vunpack.c.l.b16 %v2053
    %v2231 = vunpack.c.h.b16 %v2053
    %v2232 = vunpack.c.l.b16 %v2054
    %v2233 = vunpack.c.h.b16 %v2054
    %v2234 = vunpack.c.l.b16 %v2055
    %v2235 = vunpack.c.h.b16 %v2055
    %v2236 = vunpack.c.l.b16 %v2056
    %v2237 = vunpack.c.h.b16 %v2056
    %v2238 = vunpack.c.l.b16 %v2057
    %v2239 = vunpack.c.h.b16 %v2057
    %v2240 = vunpack.c.l.b16 %v2058
    %v2241 = vunpack.c.h.b16 %v2058
    %v2242 = vunpack.c.l.b16 %v2059
    %v2243 = vunpack.c.h.b16 %v2059
    %v2244 = vunpack.c.l.b16 %v2060
    %v2245 = vunpack.c.h.b16 %v2060
    %v2246 = vunpack.c.l.b16 %v2061
    %v2247 = vunpack.c.h.b16 %v2061
    %v2248 = vunpack.c.l.b16 %v2062
    %v2249 = vunpack.c.h.b16 %v2062
    %v2250 = vunpack.c.l.b16 %v2063
    %v2251 = vunpack.c.h.b16 %v2063
    %v2252 = vunpack.c.l.b16 %v2064
    %v2253 = vunpack.c.h.b16 %v2064
    %v2254 = vunpack.c.l.b16 %v2065
    %v2255 = vunpack.c.h.b16 %v2065
    %v2256 = vunpack.c.l.b16 %v2066
    %v2257 = vunpack.c.h.b16 %v2066
    %v2258 = vunpack.c.l.b16 %v2067
    %v2259 = vunpack.c.h.b16 %v2067
    %v2260 = vunpack.c.l.b16 %v2068
    %v2261 = vunpack.c.h.b16 %v2068
    %v2262 = vunpack.c.l.b16 %v2069
    %v2263 = vunpack.c.h.b16 %v2069
    %v2264 = vunpack.c.l.b16 %v2070
    %v2265 = vunpack.c.h.b16 %v2070
    %v2266 = vunpack.c.l.b16 %v2071
    %v2267 = vunpack.c.h.b16 %v2071
    %v2268 = vunpack.c.l.b16 %v2072
    %v2269 = vunpack.c.h.b16 %v2072
    %v2270 = vunpack.c.l.b16 %v2073
    %v2271 = vunpack.c.h.b16 %v2073
    %v2272 = vunpack.c.l.b16 %v2074
    %v2273 = vunpack.c.h.b16 %v2074
    %v2274 = vunpack.c.l.b16 %v2075
    %v2275 = vunpack.c.h.b16 %v2075
    %v2276 = vunpack.c.l.b16 %v2076
    %v2277 = vunpack.c.h.b16 %v2076
    %v2278 = vunpack.c.l.b16 %v2077
    %v2279 = vunpack.c.h.b16 %v2077
    %v2280 = vunpack.c.l.b16 %v2078
    %v2281 = vunpack.c.h.b16 %v2078
    %v2282 = vunpack.c.l.b16 %v2079
    %v2283 = vunpack.c.h.b16 %v2079
    %v2284 = vpack.c.b16 %v2158, %v2156
    %v2285 = vpack.c.b16 %v2159, %v2157
    %v2286 = vpack.c.b16 %v2162, %v2160
    %v2287 = vpack.c.b16 %v2163, %v2161
    %v2288 = vpack.c.b16 %v2166, %v2164
    %v2289 = vpack.c.b16 %v2167, %v2165
    %v2290 = vpack.c.b16 %v2170, %v2168
    %v2291 = vpack.c.b16 %v2171, %v2169
    %v2292 = vpack.c.b16 %v2174, %v2172
    %v2293 = vpack.c.b16 %v2175, %v2173
    %v2294 = vpack.c.b16 %v2178, %v2176
    %v2295 = vpack.c.b16 %v2179, %v2177
    %v2296 = vpack.c.b16 %v2182, %v2180
    %v2297 = vpack.c.b16 %v2183, %v2181
    %v2298 = vpack.c.b16 %v2186, %v2184
    %v2299 = vpack.c.b16 %v2187, %v2185
    %v2300 = vpack.c.b16 %v2190, %v2188
    %v2301 = vpack.c.b16 %v2191, %v2189
    %v2302 = vpack.c.b16 %v2194, %v2192
    %v2303 = vpack.c.b16 %v2195, %v2193
    %v2304 = vpack.c.b16 %v2198, %v2196
    %v2305 = vpack.c.b16 %v2199, %v2197
    %v2306 = vpack.c.b16 %v2202, %v2200
    %v2307 = vpack.c.b16 %v2203, %v2201
    %v2308 = vpack.c.b16 %v2206, %v2204
    %v2309 = vpack.c.b16 %v2207, %v2205
    %v2310 = vpack.c.b16 %v2210, %v2208
    %v2311 = vpack.c.b16 %v2211, %v2209
    %v2312 = vpack.c.b16 %v2214, %v2212
    %v2313 = vpack.c.b16 %v2215, %v2213
    %v2314 = vpack.c.b16 %v2218, %v2216
    %v2315 = vpack.c.b16 %v2219, %v2217
    %v2316 = vpack.c.b16 %v2222, %v2220
    %v2317 = vpack.c.b16 %v2223, %v2221
    %v2318 = vpack.c.b16 %v2226, %v2224
    %v2319 = vpack.c.b16 %v2227, %v2225
    %v2320 = vpack.c.b16 %v2230, %v2228
    %v2321 = vpack.c.b16 %v2231, %v2229
    %v2322 = vpack.c.b16 %v2234, %v2232
    %v2323 = vpack.c.b16 %v2235, %v2233
    %v2324 = vpack.c.b16 %v2238, %v2236
    %v2325 = vpack.c.b16 %v2239, %v2237
    %v2326 = vpack.c.b16 %v2242, %v2240
    %v2327 = vpack.c.b16 %v2243, %v2241
    %v2328 = vpack.c.b16 %v2246, %v2244
    %v2329 = vpack.c.b16 %v2247, %v2245
    %v2330 = vpack.c.b16 %v2250, %v2248
    %v2331 = vpack.c.b16 %v2251, %v2249
    %v2332 = vpack.c.b16 %v2254, %v2252
    %v2333 = vpack.c.b16 %v2255, %v2253
    %v2334 = vpack.c.b16 %v2258, %v2256
    %v2335 = vpack.c.b16 %v2259, %v2257
    %v2336 = vpack.c.b16 %v2262, %v2260
    %v2337 = vpack.c.b16 %v2263, %v2261
    %v2338 = vpack.c.b16 %v2266, %v2264
    %v2339 = vpack.c.b16 %v2267, %v2265
    %v2340 = vpack.c.b16 %v2270, %v2268
    %v2341 = vpack.c.b16 %v2271, %v2269
    %v2342 = vpack.c.b16 %v2274, %v2272
    %v2343 = vpack.c.b16 %v2275, %v2273
    %v2344 = vpack.c.b16 %v2278, %v2276
    %v2345 = vpack.c.b16 %v2279, %v2277
    %v2346 = vpack.c.b16 %v2282, %v2280
    %v2347 = vpack.c.b16 %v2283, %v2281
    %2412 = vmatprep.subr.bf16.mxu0 %v2299
    %2413 = vmatpush1.bf16.msra.mxu0 %v2298
    %2414 = vmatprep.subr.bf16.mxu0 %v2297
    %2415 = vmatpush1.bf16.msra.mxu0 %v2296
    %2416 = vmatprep.subr.bf16.mxu0 %v2295
    %2417 = vmatpush1.bf16.msra.mxu0 %v2294
    %2418 = vmatprep.subr.bf16.mxu0 %v2293
    %2419 = vmatpush1.bf16.msra.mxu0 %v2292
    %2420 = vmatprep.subr.bf16.mxu0 %v2291
    %2421 = vmatpush1.bf16.msra.mxu0 %v2290
    %2422 = vmatprep.subr.bf16.mxu0 %v2289
    %2423 = vmatpush1.bf16.msra.mxu0 %v2288
    %2424 = vmatprep.subr.bf16.mxu0 %v2287
    %2425 = vmatpush1.bf16.msra.mxu0 %v2286
    %2426 = vmatprep.subr.bf16.mxu0 %v2285
    %2427 = vmatpush1.bf16.msra.mxu0 %v2284
    %2428 = vmatprep.subr.bf16.mxu0 %v2315
    %2429 = vmatpush2.bf16.msra.mxu0 %v2314
    %2430 = vmatprep.subr.bf16.mxu0 %v2313
    %2431 = vmatpush2.bf16.msra.mxu0 %v2312
    %2432 = vmatprep.subr.bf16.mxu0 %v2311
    %2433 = vmatpush2.bf16.msra.mxu0 %v2310
    %2434 = vmatprep.subr.bf16.mxu0 %v2309
    %2435 = vmatpush2.bf16.msra.mxu0 %v2308
    %2436 = vmatprep.subr.bf16.mxu0 %v2307
    %2437 = vmatpush2.bf16.msra.mxu0 %v2306
    %2438 = vmatprep.subr.bf16.mxu0 %v2305
    %2439 = vmatpush2.bf16.msra.mxu0 %v2304
    %2440 = vmatprep.subr.bf16.mxu0 %v2303
    %2441 = vmatpush2.bf16.msra.mxu0 %v2302
    %2442 = vmatprep.subr.bf16.mxu0 %v2301
    %2443 = vmatpush2.bf16.msra.mxu0 %v2300
    %2444 = vmatprep.mubr.bf16.mxu0 %v2013
    %2445 = vmatmul.mubr.bf16.gmra.mxu0 %v2012
    %v2446 = vpop.f32.mrf.mxu0
    %v2447 = vadd.f32 %v2085, %v2446
    %v2448 = vpop.f32.mrf.mxu0
    %v2449 = vadd.f32 %v2089, %v2448
    %v2450 = vpop.f32.mrf.mxu0
    %v2451 = vpop.f32.mrf.mxu0
    %2452 = vdwg.mxu0
    %2453 = vmatprep.subr.bf16.mxu0 %v2331
    %2454 = vmatpush1.bf16.msra.mxu0 %v2330
    %2455 = vmatprep.subr.bf16.mxu0 %v2329
    %2456 = vmatpush1.bf16.msra.mxu0 %v2328
    %2457 = vmatprep.subr.bf16.mxu0 %v2327
    %2458 = vmatpush1.bf16.msra.mxu0 %v2326
    %2459 = vmatprep.subr.bf16.mxu0 %v2325
    %2460 = vmatpush1.bf16.msra.mxu0 %v2324
    %2461 = vmatprep.subr.bf16.mxu0 %v2323
    %2462 = vmatpush1.bf16.msra.mxu0 %v2322
    %2463 = vmatprep.subr.bf16.mxu0 %v2321
    %2464 = vmatpush1.bf16.msra.mxu0 %v2320
    %2465 = vmatprep.subr.bf16.mxu0 %v2319
    %2466 = vmatpush1.bf16.msra.mxu0 %v2318
    %2467 = vmatprep.subr.bf16.mxu0 %v2317
    %2468 = vmatpush1.bf16.msra.mxu0 %v2316
    %2469 = vmatprep.subr.bf16.mxu0 %v2347
    %2470 = vmatpush2.bf16.msra.mxu0 %v2346
    %2471 = vmatprep.subr.bf16.mxu0 %v2345
    %2472 = vmatpush2.bf16.msra.mxu0 %v2344
    %2473 = vmatprep.subr.bf16.mxu0 %v2343
    %2474 = vmatpush2.bf16.msra.mxu0 %v2342
    %2475 = vmatprep.subr.bf16.mxu0 %v2341
    %2476 = vmatpush2.bf16.msra.mxu0 %v2340
    %2477 = vmatprep.subr.bf16.mxu0 %v2339
    %2478 = vmatpush2.bf16.msra.mxu0 %v2338
    %2479 = vmatprep.subr.bf16.mxu0 %v2337
    %2480 = vmatpush2.bf16.msra.mxu0 %v2336
    %2481 = vmatprep.subr.bf16.mxu0 %v2335
    %2482 = vmatpush2.bf16.msra.mxu0 %v2334
    %2483 = vmatprep.subr.bf16.mxu0 %v2333
    %2484 = vmatpush2.bf16.msra.mxu0 %v2332
    %2485 = vmatprep.mubr.bf16.mxu0 %v2015
    %2486 = vmatmul.mubr.bf16.gmra.mxu0 %v2014
    %v2487 = vpop.f32.mrf.mxu0
    %v2488 = vadd.f32 %v2447, %v2487
    %v2489 = vpop.f32.mrf.mxu0
    %v2490 = vadd.f32 %v2449, %v2489
    %v2491 = vpop.f32.mrf.mxu0
    %v2492 = vpop.f32.mrf.mxu0
    %2493 = vdwg.mxu0
    %v2494 = vrot.slane %v2488, 4
    %v2495 = vadd.f32 %v2488, %v2494
    %v2496 = vrot.slane %v2495, 2
    %v2497 = vadd.f32 %v2495, %v2496
    %v2498 = vrot.slane %v2497, 1
    %v2499 = vadd.f32 %v2497, %v2498
    %v2500 = vrot.slane %v2490, 4
    %v2501 = vadd.f32 %v2490, %v2500
    %v2502 = vrot.slane %v2501, 2
    %v2503 = vadd.f32 %v2501, %v2502
    %v2504 = vrot.slane %v2503, 1
    %v2505 = vadd.f32 %v2503, %v2504
    %v2506 = vrcp.pop 8.0
    %v2507 = vmul.f32 %v2499, %v2506
    %v2508 = vmul.f32 %v2505, %v2506
    %v2509 = vsub.f32 %v2488, %v2507
    %v2510 = vsub.f32 %v2490, %v2508
    %v2511 = vmul.f32 %v2509, %v2509
    %v2512 = vmul.f32 %v2510, %v2510
    %v2513 = vrot.slane %v2511, 4
    %v2514 = vadd.f32 %v2511, %v2513
    %v2515 = vrot.slane %v2514, 2
    %v2516 = vadd.f32 %v2514, %v2515
    %v2517 = vrot.slane %v2516, 1
    %v2518 = vadd.f32 %v2516, %v2517
    %v2519 = vrot.slane %v2512, 4
    %v2520 = vadd.f32 %v2512, %v2519
    %v2521 = vrot.slane %v2520, 2
    %v2522 = vadd.f32 %v2520, %v2521
    %v2523 = vrot.slane %v2522, 1
    %v2524 = vadd.f32 %v2522, %v2523
    %v2525 = vmul.f32 %v2518, %v2506
    %v2526 = vmul.f32 %v2524, %v2506
    %v2527 = vadd.f32 %v2525, 1e-05
    %v2528 = vadd.f32 %v2526, 1e-05
    %v2529 = vrsqrt.pop %v2527
    %v2530 = vrsqrt.pop %v2528
    %v2531 = vmul.f32 %v2509, %v2529
    %v2532 = vmul.f32 %v2510, %v2530
    %v2533 = vld [vmem:[%s5] sm:$0x3]
    %v2535 = vlaneseq
    %v2536 = vshrl.u32 %v2535, 7
    %v2537 = vsub.s32 0, %v2536
    %v2538 = vrot.slane %v2533, %v2537
    %v2539 = vlaneseq
    %v2540 = vshrl.u32 %v2539, 7
    %v2541 = vsub.s32 1, %v2540
    %v2542 = vrot.slane %v2533, %v2541
    %v2545 = vmul.f32 %v2531, %v2538
    %v2546 = vmul.f32 %v2532, %v2542
    %v2547 = vld [vmem:[%s6] sm:$0x3]
    %v2549 = vlaneseq
    %v2550 = vshrl.u32 %v2549, 7
    %v2551 = vsub.s32 0, %v2550
    %v2552 = vrot.slane %v2547, %v2551
    %v2553 = vlaneseq
    %v2554 = vshrl.u32 %v2553, 7
    %v2555 = vsub.s32 1, %v2554
    %v2556 = vrot.slane %v2547, %v2555
    %v2559 = vadd.f32 %v2545, %v2552
    %v2560 = vadd.f32 %v2546, %v2556
    %vm2561 = vcmp.gt.f32.partialorder %v2559, 0.0
    %vm2562 = vcmp.gt.f32.partialorder %v2560, 0.0
    %v2563 = vmul.f32 %v2559, 0.2
    %v2564 = vmul.f32 %v2560, 0.2
    %v2565 = vsel %vm2561, %v2559, %v2563
    %v2566 = vsel %vm2562, %v2560, %v2564
    %v2567 = vpack.c.bf16 %v2565, %v2565
    %v2568 = vpack.c.bf16 %v2566, %v2566
    %v2569 = vld [vmem:[#allocation10] sm:$0xf]
    %v2570 = vld [vmem:[#allocation10 + $0x4] sm:$0xf]
    %v2571 = vld [vmem:[#allocation10 + $0x8] sm:$0xf]
    %v2572 = vld [vmem:[#allocation10 + $0xc] sm:$0xf]
    %v2573 = vld [vmem:[#allocation10 + $0x10] sm:$0xf]
    %v2574 = vld [vmem:[#allocation10 + $0x14] sm:$0xf]
    %v2575 = vld [vmem:[#allocation10 + $0x18] sm:$0xf]
    %v2576 = vld [vmem:[#allocation10 + $0x1c] sm:$0xf]
    %v2577 = vld [vmem:[#allocation10 + $0x20] sm:$0xf]
    %v2578 = vld [vmem:[#allocation10 + $0x24] sm:$0xf]
    %v2579 = vld [vmem:[#allocation10 + $0x28] sm:$0xf]
    %v2580 = vld [vmem:[#allocation10 + $0x2c] sm:$0xf]
    %v2581 = vld [vmem:[#allocation10 + $0x30] sm:$0xf]
    %v2582 = vld [vmem:[#allocation10 + $0x34] sm:$0xf]
    %v2583 = vld [vmem:[#allocation10 + $0x38] sm:$0xf]
    %v2584 = vld [vmem:[#allocation10 + $0x3c] sm:$0xf]
    %v2585 = vld [vmem:[#allocation10 + $0x40] sm:$0xf]
    %v2586 = vld [vmem:[#allocation10 + $0x44] sm:$0xf]
    %v2587 = vld [vmem:[#allocation10 + $0x48] sm:$0xf]
    %v2588 = vld [vmem:[#allocation10 + $0x4c] sm:$0xf]
    %v2589 = vld [vmem:[#allocation10 + $0x50] sm:$0xf]
    %v2590 = vld [vmem:[#allocation10 + $0x54] sm:$0xf]
    %v2591 = vld [vmem:[#allocation10 + $0x58] sm:$0xf]
    %v2592 = vld [vmem:[#allocation10 + $0x5c] sm:$0xf]
    %v2593 = vld [vmem:[#allocation10 + $0x60] sm:$0xf]
    %v2594 = vld [vmem:[#allocation10 + $0x64] sm:$0xf]
    %v2595 = vld [vmem:[#allocation10 + $0x68] sm:$0xf]
    %v2596 = vld [vmem:[#allocation10 + $0x6c] sm:$0xf]
    %v2597 = vld [vmem:[#allocation10 + $0x70] sm:$0xf]
    %v2598 = vld [vmem:[#allocation10 + $0x74] sm:$0xf]
    %v2599 = vld [vmem:[#allocation10 + $0x78] sm:$0xf]
    %v2600 = vld [vmem:[#allocation10 + $0x7c] sm:$0xf]
    %v2601 = vld [vmem:[%s8] sm:$0x1]
    %v2603 = vlaneseq
    %v2604 = vshrl.u32 %v2603, 7
    %v2605 = vsub.s32 0, %v2604
    %v2606 = vrot.slane %v2601, %v2605
    %v2640 = vunpack.c.l.b16 %v2569
    %v2641 = vunpack.c.l.b16 %v2570
    %v2642 = vunpack.c.l.b16 %v2571
    %v2643 = vunpack.c.l.b16 %v2572
    %v2644 = vunpack.c.l.b16 %v2573
    %v2645 = vunpack.c.l.b16 %v2574
    %v2646 = vunpack.c.l.b16 %v2575
    %v2647 = vunpack.c.l.b16 %v2576
    %v2648 = vunpack.c.l.b16 %v2577
    %v2649 = vunpack.c.l.b16 %v2578
    %v2650 = vunpack.c.l.b16 %v2579
    %v2651 = vunpack.c.l.b16 %v2580
    %v2652 = vunpack.c.l.b16 %v2581
    %v2653 = vunpack.c.l.b16 %v2582
    %v2654 = vunpack.c.l.b16 %v2583
    %v2655 = vunpack.c.l.b16 %v2584
    %v2656 = vunpack.c.l.b16 %v2585
    %v2657 = vunpack.c.l.b16 %v2586
    %v2658 = vunpack.c.l.b16 %v2587
    %v2659 = vunpack.c.l.b16 %v2588
    %v2660 = vunpack.c.l.b16 %v2589
    %v2661 = vunpack.c.l.b16 %v2590
    %v2662 = vunpack.c.l.b16 %v2591
    %v2663 = vunpack.c.l.b16 %v2592
    %v2664 = vunpack.c.l.b16 %v2593
    %v2665 = vunpack.c.l.b16 %v2594
    %v2666 = vunpack.c.l.b16 %v2595
    %v2667 = vunpack.c.l.b16 %v2596
    %v2668 = vunpack.c.l.b16 %v2597
    %v2669 = vunpack.c.l.b16 %v2598
    %v2670 = vunpack.c.l.b16 %v2599
    %v2671 = vunpack.c.l.b16 %v2600
    %v2672 = vpack.c.b16 %v2641, %v2640
    %v2673 = vpack.c.b16 %v2643, %v2642
    %v2674 = vpack.c.b16 %v2645, %v2644
    %v2675 = vpack.c.b16 %v2647, %v2646
    %v2676 = vpack.c.b16 %v2649, %v2648
    %v2677 = vpack.c.b16 %v2651, %v2650
    %v2678 = vpack.c.b16 %v2653, %v2652
    %v2679 = vpack.c.b16 %v2655, %v2654
    %v2680 = vpack.c.b16 %v2657, %v2656
    %v2681 = vpack.c.b16 %v2659, %v2658
    %v2682 = vpack.c.b16 %v2661, %v2660
    %v2683 = vpack.c.b16 %v2663, %v2662
    %v2684 = vpack.c.b16 %v2665, %v2664
    %v2685 = vpack.c.b16 %v2667, %v2666
    %v2686 = vpack.c.b16 %v2669, %v2668
    %v2687 = vpack.c.b16 %v2671, %v2670
    %2704 = vmatprep.subr.bf16.mxu0 0
    %2705 = vmatpush1.bf16.msra.mxu0 %v2679
    %2706 = vmatprep.subr.bf16.mxu0 0
    %2707 = vmatpush1.bf16.msra.mxu0 %v2678
    %2708 = vmatprep.subr.bf16.mxu0 0
    %2709 = vmatpush1.bf16.msra.mxu0 %v2677
    %2710 = vmatprep.subr.bf16.mxu0 0
    %2711 = vmatpush1.bf16.msra.mxu0 %v2676
    %2712 = vmatprep.subr.bf16.mxu0 0
    %2713 = vmatpush1.bf16.msra.mxu0 %v2675
    %2714 = vmatprep.subr.bf16.mxu0 0
    %2715 = vmatpush1.bf16.msra.mxu0 %v2674
    %2716 = vmatprep.subr.bf16.mxu0 0
    %2717 = vmatpush1.bf16.msra.mxu0 %v2673
    %2718 = vmatprep.subr.bf16.mxu0 0
    %2719 = vmatpush1.bf16.msra.mxu0 %v2672
    %2720 = vmatprep.subr.bf16.mxu0 0
    %2721 = vmatpush2.bf16.msra.mxu0 %v2687
    %2722 = vmatprep.subr.bf16.mxu0 0
    %2723 = vmatpush2.bf16.msra.mxu0 %v2686
    %2724 = vmatprep.subr.bf16.mxu0 0
    %2725 = vmatpush2.bf16.msra.mxu0 %v2685
    %2726 = vmatprep.subr.bf16.mxu0 0
    %2727 = vmatpush2.bf16.msra.mxu0 %v2684
    %2728 = vmatprep.subr.bf16.mxu0 0
    %2729 = vmatpush2.bf16.msra.mxu0 %v2683
    %2730 = vmatprep.subr.bf16.mxu0 0
    %2731 = vmatpush2.bf16.msra.mxu0 %v2682
    %2732 = vmatprep.subr.bf16.mxu0 0
    %2733 = vmatpush2.bf16.msra.mxu0 %v2681
    %2734 = vmatprep.subr.bf16.mxu0 0
    %2735 = vmatpush2.bf16.msra.mxu0 %v2680
    %2736 = vmatprep.mubr.bf16.mxu0 %v2568
    %2737 = vmatmul.mubr.bf16.gmra.mxu0 %v2567
    %v2738 = vpop.f32.mrf.mxu0
    %v2739 = vadd.f32 %v2606, %v2738
    %v2740 = vpop.f32.mrf.mxu0
    %v2741 = vpop.f32.mrf.mxu0
    %v2742 = vpop.f32.mrf.mxu0
    %2743 = vdwg.mxu0
    %v2744 = vsub.f32 0.0, %v2739
    %v2745 = vmul.f32 %v2744, 1.442695
    %v2746 = vpow.pop %v2745
    %v2747 = vadd.f32 %v2746, 1.0
    %v2748 = vrcp.pop %v2747
    %v2749 = vlaneseq
    %v2750 = vand.u32 %v2749, 127
    %vm2751 = vcmp.lt.s32.totalorder %v2750, 1
    %v2752 = vsel %vm2751, %v2748, %v2739
    %2753 = vst [vmem:[#allocation11] sm:$0xff] %v2752
    // Predicated region
    $region58: #{tpu_custom_call.1} parent=1 // pred_check
      _
    $region59: #{tpu_custom_call.1} parent=1 // pred_check_branch
      %2755 = sbr.rel (0) target = $region61
    $region60: #{tpu_custom_call.1} parent=1 // pred_region
      %s2757 = ssub.s32 128, 128
      %2758 = vsyncadd [#allocation4], %s2757
      %s2760 = sshll.u32 [#allocation11], 4
      %s2761 = int_to_ptr.vmem [resolvable:$true] %s2760
      %2763 = dma.vmem_to_hbm [thread:$0]  %s2761, 128, %s9, [#allocation4]
    $region61: #{tpu_custom_call.1} parent=1 // pred_fallthru
      _
    // Predicated region
    $region62: #{tpu_custom_call.1} parent=1 // pred_check
      _
    $region63: #{tpu_custom_call.1} parent=1 // pred_check_branch
      %2765 = sbr.rel (0) target = $region65
    $region64: #{tpu_custom_call.1} parent=1 // pred_region
      %2766 = dma.done [#allocation4], 128
    $region65: #{tpu_custom_call.1} parent=1 // pred_fallthru
      _
    %2767 = vsyncpa [#allocation3], 1
    %2768 = vsyncpa [#allocation6], 1
    %2769 = vsyncpa [#allocation9], 1
    %2770 = vsyncpa [#allocation4], 1

</llo_original>
